<compile_context>
chip_gen: v7x
topology: tpu7x:2x2x1
jax: 0.10.0
libtpu: 0.0.40
codegen_flags: <defaults>
</compile_context>

<pallas_src>
import jax
import jax.numpy as jnp
from jax.experimental import pallas as pl
from jax.experimental.pallas import tpu as pltpu

EMBED_SIZE = 32          # embed_size == n_filters == char-embed dim in the module
MAX_WORD_LEN = 21        # hardcoded in ModelEmbeddings.__init__
KERNEL_SIZE = 5
L_OUT = MAX_WORD_LEN - KERNEL_SIZE + 1


def _round_up(x, m):
    return ((x + m - 1) // m) * m


def char_cnn_highway_kernel(x_ref, wconv_ref, bconv_ref, whw_ref, bhw_ref,
                            out_ref):
    # x_ref:     (L*E, tile_n) bf16  lane-dense; rows flattened as l*E + c, i.e.
    #            x_ref[l*E + c, n] = buggy_reshape(word n)[c, l]
    # wconv_ref: (E, K*E)      bf16  wconv[o, k*E + c] = conv_w[o, c, k]
    # bconv_ref: (E, 1)        f32
    # whw_ref:   (2E, E)       bf16  rows = [proj_w ; gate_w]
    # bhw_ref:   (2E, 1)       f32
    # out_ref:   (E, tile_n)   f32
    e = out_ref.shape[0]
    w = wconv_ref[...]                                         # (32, 160) bf16

    def conv_at(t):
        # Contiguous sublane slice (offset t*32 is bf16-pack aligned), fed
        # straight to the MXU in bf16 with f32 accumulation.
        rhs = x_ref[pl.ds(t * e, KERNEL_SIZE * e), :]          # (160, tile_n)
        return jax.lax.dot_general(
            w, rhs, dimension_numbers=(((1,), (0,)), ((), ())),
            preferred_element_type=jnp.float32)                # (32, tile_n) f32

    # Max-over-time.  Bias add and ReLU commute with max -> apply them once.
    m = conv_at(0)
    for t in range(1, L_OUT):
        m = jnp.maximum(m, conv_at(t))
    pooled = jnp.maximum(m + bconv_ref[...], 0.0)              # (32, tile_n) f32

    # Highway: fused (2E, E) @ (E, tile_n) matmul, bf16 in / f32 acc.
    h = jax.lax.dot_general(
        whw_ref[...], pooled.astype(jnp.bfloat16),
        dimension_numbers=(((1,), (0,)), ((), ())),
        preferred_element_type=jnp.float32) + bhw_ref[...]     # (64, tile_n) f32
    proj = jnp.maximum(h[:e, :], 0.0)
    gate = jax.nn.sigmoid(h[e:, :])

    # Dropout(p=0.3) is identity at inference time.
    out_ref[...] = (gate * proj + (1.0 - gate) * pooled).astype(out_ref.dtype)


def model_embeddings_forward(input_tensor, params, *, tile_n=1024):
    """input_tensor: int32 (sentence_length, batch_size, max_word_length)."""
    emb_table = params["emb"]                                  # (V, E) f32
    S, B, L = input_tensor.shape
    E = emb_table.shape[1]
    N = S * B
    K = KERNEL_SIZE

    # Char-embedding lookup in bf16 (halves the dominant HBM stream).
    gathered = emb_table.astype(jnp.bfloat16)[input_tensor.reshape(N, L)]  # (N,L,E)
    # Faithful to the PyTorch module: the permute result is discarded and each
    # word's raw row-major buffer is reinterpreted as (E, L).  The kernel wants
    # that buggy view as a lane-dense (L*E, N) slab with words on lanes:
    #   xT[l*E + c, n] = buggy[n, c, l]
    buggy = gathered.reshape(N, E, L)
    xT = jnp.transpose(buggy, (2, 1, 0)).reshape(L * E, N)     # (672, N) bf16

    # Lane tile sizing: multiples of 128 (dense unmasked stores), big enough to
    # amortize the ~0.35 us per-grid-step overhead, but capped near N/2 so a
    # multi-step grid exists for v7x's two TensorCores whenever N > 128.
    tile_n = max(128, _round_up(min(tile_n, -(-N // 2)), 128))
    N_pad = _round_up(N, tile_n)
    if N_pad != N:
        xT = jnp.pad(xT, ((0, 0), (0, N_pad - N)))

    # im2col-folded conv weight on rows: wconv[o, k*E + c] = conv_w[o, c, k].
    wconv = jnp.transpose(params["conv_w"], (0, 2, 1)).reshape(E, K * E)
    wconv = wconv.astype(jnp.bfloat16)
    bconv = params["conv_b"].reshape(E, 1).astype(jnp.float32)
    # Fused highway weight [proj ; gate]: (2E, E), bias (2E, 1).
    whw = jnp.concatenate([params["proj_w"], params["gate_w"]],
                          axis=0).astype(jnp.bfloat16)
    bhw = jnp.concatenate([params["proj_b"], params["gate_b"]]
                          ).reshape(2 * E, 1).astype(jnp.float32)

    grid_spec = pltpu.PrefetchScalarGridSpec(
        num_scalar_prefetch=0,
        grid=(N_pad // tile_n,),
        in_specs=[
            pl.BlockSpec((L * E, tile_n), lambda i: (0, i)),   # activations
            pl.BlockSpec((E, K * E), lambda i: (0, 0)),        # folded conv W
            pl.BlockSpec((E, 1), lambda i: (0, 0)),            # conv bias
            pl.BlockSpec((2 * E, E), lambda i: (0, 0)),        # highway W
            pl.BlockSpec((2 * E, 1), lambda i: (0, 0)),        # highway bias
        ],
        out_specs=pl.BlockSpec((E, tile_n), lambda i: (0, i)),
    )
    out = pl.pallas_call(
        char_cnn_highway_kernel,
        out_shape=jax.ShapeDtypeStruct((E, N_pad), jnp.float32),
        grid_spec=grid_spec,
        compiler_params=pltpu.CompilerParams(
            dimension_semantics=("parallel",)),
    )(xT, wconv, bconv, whw, bhw)

    # TODO(synk): nn.Dropout(p=0.3) is identity in eval mode; training-mode
    # dropout would need pltpu.prng_random_bits + masking inside the kernel.
    return out[:, :N].T.reshape(S, B, E)


def reference_forward(input_tensor, params):
    """Plain-JAX f32 reference mirroring the PyTorch forward (eval mode)."""
    emb_table = params["emb"]
    S, B, L = input_tensor.shape
    E = emb_table.shape[1]
    x = emb_table[input_tensor].reshape(S * B, E, L)           # buggy (N, E, L)
    w = params["conv_w"]                                       # (E_out, E_in, K)
    conv = jnp.stack(
        [jnp.einsum("ncl,ocl->no", x[:, :, t:t + KERNEL_SIZE], w)
         for t in range(L_OUT)], axis=-1) + params["conv_b"][None, :, None]
    pooled = jnp.max(jax.nn.relu(conv), axis=-1)               # (N, E)
    proj = jax.nn.relu(pooled @ params["proj_w"].T + params["proj_b"])
    gate = jax.nn.sigmoid(pooled @ params["gate_w"].T + params["gate_b"])
    out = gate * proj + (1.0 - gate) * pooled
    return out.reshape(S, B, E)


def init_params(key, vocab_size, embed_size, pad_idx=0):
    ks = jax.random.split(key, 7)
    emb = jax.random.normal(ks[0], (vocab_size, embed_size), jnp.float32)
    emb = emb.at[pad_idx].set(0.0)                             # padding_idx row zero
    scale = 0.1
    return {
        "emb": emb,
        "conv_w": scale * jax.random.normal(
            ks[1], (embed_size, embed_size, KERNEL_SIZE), jnp.float32),
        "conv_b": scale * jax.random.normal(ks[2], (embed_size,), jnp.float32),
        "proj_w": scale * jax.random.normal(
            ks[3], (embed_size, embed_size), jnp.float32),
        "proj_b": scale * jax.random.normal(ks[4], (embed_size,), jnp.float32),
        "gate_w": scale * jax.random.normal(
            ks[5], (embed_size, embed_size), jnp.float32),
        "gate_b": scale * jax.random.normal(ks[6], (embed_size,), jnp.float32),
    }


if __name__ == "__main__":
    key = jax.random.PRNGKey(0)
    k_inp, k_inp2, k_par = jax.random.split(key, 3)

    # Synthetic character vocab: '<pad>' -> 0, plus 29 more chars.
    vocab_size = 30
    pad_idx = 0
    params = init_params(k_par, vocab_size, EMBED_SIZE, pad_idx)

    # Small demo: N = 18 words (single grid step).
    sentence_length, batch_size = 6, 3
    input_small = jax.random.randint(
        k_inp, (sentence_length, batch_size, MAX_WORD_LEN), 0, vocab_size,
        dtype=jnp.int32)
    out = jax.block_until_ready(model_embeddings_forward(input_small, params))
    ref = reference_forward(input_small, params)
    assert out.shape == (sentence_length, batch_size, EMBED_SIZE)
    # bf16 activations / matmul operands vs the f32 reference -> loosened tol.
    assert jnp.allclose(out, ref, atol=5e-2, rtol=5e-2), "mismatch (small)"

    # Multi-tile shape: N = 320 -> tile_n = 256, 2 grid steps (exercises the
    # index maps and gives both v7x TensorCores work).
    S2, B2 = 20, 16
    input_big = jax.random.randint(
        k_inp2, (S2, B2, MAX_WORD_LEN), 0, vocab_size, dtype=jnp.int32)
    out2 = jax.block_until_ready(model_embeddings_forward(input_big, params))
    ref2 = reference_forward(input_big, params)
    assert out2.shape == (S2, B2, EMBED_SIZE)
    assert jnp.allclose(out2, ref2, atol=5e-2, rtol=5e-2), "mismatch (multi-tile)"

    print("KERNEL_OK")
</pallas_src>

<mosaic_0001>
module attributes {stable_mosaic.version = 11 : i64} {
  func.func @char_cnn_highway_kernel(%arg0: i32, %arg1: memref<672x128xbf16, #tpu.memory_space<vmem>>, %arg2: memref<32x160xbf16, #tpu.memory_space<vmem>>, %arg3: memref<32x1xf32, #tpu.memory_space<vmem>>, %arg4: memref<64x32xbf16, #tpu.memory_space<vmem>>, %arg5: memref<64x1xf32, #tpu.memory_space<vmem>>, %arg6: memref<32x128xf32, #tpu.memory_space<vmem>>) attributes {dimension_semantics = [#tpu.dimension_semantics<parallel>], iteration_bounds = array<i64: 1>, scalar_prefetch = 0 : i64, scratch_operands = 0 : i64, tpu.core_type = #tpu.core_type<tc>, window_params = [{transform_indices = @transform_0, window_bounds = array<i64: 672, 128>}, {pipeline_mode = #tpu.pipeline_mode<synchronous>, transform_indices = @transform_1, window_bounds = array<i64: 32, 160>}, {pipeline_mode = #tpu.pipeline_mode<synchronous>, transform_indices = @transform_2, window_bounds = array<i64: 32, 1>}, {pipeline_mode = #tpu.pipeline_mode<synchronous>, transform_indices = @transform_3, window_bounds = array<i64: 64, 32>}, {pipeline_mode = #tpu.pipeline_mode<synchronous>, transform_indices = @transform_4, window_bounds = array<i64: 64, 1>}, {transform_indices = @transform_5, window_bounds = array<i64: 32, 128>}]} {
    %c0 = arith.constant 0 : index
    %c0_0 = arith.constant 0 : index
    %0 = vector.load %arg2[%c0, %c0_0] : memref<32x160xbf16, #tpu.memory_space<vmem>>, vector<32x160xbf16>
    %c0_1 = arith.constant 0 : index
    %c0_2 = arith.constant 0 : index
    %1 = vector.load %arg1[%c0_1, %c0_2] : memref<672x128xbf16, #tpu.memory_space<vmem>>, vector<160x128xbf16>
    %cst = arith.constant dense<0.000000e+00> : vector<32x128xf32>
    %2 = tpu.matmul %0, %1, %cst {dimension_numbers = #tpu.dot_dimension_numbers<[1], [0], [0], [1], [0, 0, 1, 1], [], []>} : vector<32x160xbf16>, vector<160x128xbf16>, vector<32x128xf32> -> vector<32x128xf32>
    %c32 = arith.constant 32 : index
    %c0_3 = arith.constant 0 : index
    %3 = vector.load %arg1[%c32, %c0_3] : memref<672x128xbf16, #tpu.memory_space<vmem>>, vector<160x128xbf16>
    %cst_4 = arith.constant dense<0.000000e+00> : vector<32x128xf32>
    %4 = tpu.matmul %0, %3, %cst_4 {dimension_numbers = #tpu.dot_dimension_numbers<[1], [0], [0], [1], [0, 0, 1, 1], [], []>} : vector<32x160xbf16>, vector<160x128xbf16>, vector<32x128xf32> -> vector<32x128xf32>
    %5 = arith.maximumf %2, %4 : vector<32x128xf32>
    %c64 = arith.constant 64 : index
    %c0_5 = arith.constant 0 : index
    %6 = vector.load %arg1[%c64, %c0_5] : memref<672x128xbf16, #tpu.memory_space<vmem>>, vector<160x128xbf16>
    %cst_6 = arith.constant dense<0.000000e+00> : vector<32x128xf32>
    %7 = tpu.matmul %0, %6, %cst_6 {dimension_numbers = #tpu.dot_dimension_numbers<[1], [0], [0], [1], [0, 0, 1, 1], [], []>} : vector<32x160xbf16>, vector<160x128xbf16>, vector<32x128xf32> -> vector<32x128xf32>
    %8 = arith.maximumf %5, %7 : vector<32x128xf32>
    %c96 = arith.constant 96 : index
    %c0_7 = arith.constant 0 : index
    %9 = vector.load %arg1[%c96, %c0_7] : memref<672x128xbf16, #tpu.memory_space<vmem>>, vector<160x128xbf16>
    %cst_8 = arith.constant dense<0.000000e+00> : vector<32x128xf32>
    %10 = tpu.matmul %0, %9, %cst_8 {dimension_numbers = #tpu.dot_dimension_numbers<[1], [0], [0], [1], [0, 0, 1, 1], [], []>} : vector<32x160xbf16>, vector<160x128xbf16>, vector<32x128xf32> -> vector<32x128xf32>
    %11 = arith.maximumf %8, %10 : vector<32x128xf32>
    %c128 = arith.constant 128 : index
    %c0_9 = arith.constant 0 : index
    %12 = vector.load %arg1[%c128, %c0_9] : memref<672x128xbf16, #tpu.memory_space<vmem>>, vector<160x128xbf16>
    %cst_10 = arith.constant dense<0.000000e+00> : vector<32x128xf32>
    %13 = tpu.matmul %0, %12, %cst_10 {dimension_numbers = #tpu.dot_dimension_numbers<[1], [0], [0], [1], [0, 0, 1, 1], [], []>} : vector<32x160xbf16>, vector<160x128xbf16>, vector<32x128xf32> -> vector<32x128xf32>
    %14 = arith.maximumf %11, %13 : vector<32x128xf32>
    %c160 = arith.constant 160 : index
    %c0_11 = arith.constant 0 : index
    %15 = vector.load %arg1[%c160, %c0_11] : memref<672x128xbf16, #tpu.memory_space<vmem>>, vector<160x128xbf16>
    %cst_12 = arith.constant dense<0.000000e+00> : vector<32x128xf32>
    %16 = tpu.matmul %0, %15, %cst_12 {dimension_numbers = #tpu.dot_dimension_numbers<[1], [0], [0], [1], [0, 0, 1, 1], [], []>} : vector<32x160xbf16>, vector<160x128xbf16>, vector<32x128xf32> -> vector<32x128xf32>
    %17 = arith.maximumf %14, %16 : vector<32x128xf32>
    %c192 = arith.constant 192 : index
    %c0_13 = arith.constant 0 : index
    %18 = vector.load %arg1[%c192, %c0_13] : memref<672x128xbf16, #tpu.memory_space<vmem>>, vector<160x128xbf16>
    %cst_14 = arith.constant dense<0.000000e+00> : vector<32x128xf32>
    %19 = tpu.matmul %0, %18, %cst_14 {dimension_numbers = #tpu.dot_dimension_numbers<[1], [0], [0], [1], [0, 0, 1, 1], [], []>} : vector<32x160xbf16>, vector<160x128xbf16>, vector<32x128xf32> -> vector<32x128xf32>
    %20 = arith.maximumf %17, %19 : vector<32x128xf32>
    %c224 = arith.constant 224 : index
    %c0_15 = arith.constant 0 : index
    %21 = vector.load %arg1[%c224, %c0_15] : memref<672x128xbf16, #tpu.memory_space<vmem>>, vector<160x128xbf16>
    %cst_16 = arith.constant dense<0.000000e+00> : vector<32x128xf32>
    %22 = tpu.matmul %0, %21, %cst_16 {dimension_numbers = #tpu.dot_dimension_numbers<[1], [0], [0], [1], [0, 0, 1, 1], [], []>} : vector<32x160xbf16>, vector<160x128xbf16>, vector<32x128xf32> -> vector<32x128xf32>
    %23 = arith.maximumf %20, %22 : vector<32x128xf32>
    %c256 = arith.constant 256 : index
    %c0_17 = arith.constant 0 : index
    %24 = vector.load %arg1[%c256, %c0_17] : memref<672x128xbf16, #tpu.memory_space<vmem>>, vector<160x128xbf16>
    %cst_18 = arith.constant dense<0.000000e+00> : vector<32x128xf32>
    %25 = tpu.matmul %0, %24, %cst_18 {dimension_numbers = #tpu.dot_dimension_numbers<[1], [0], [0], [1], [0, 0, 1, 1], [], []>} : vector<32x160xbf16>, vector<160x128xbf16>, vector<32x128xf32> -> vector<32x128xf32>
    %26 = arith.maximumf %23, %25 : vector<32x128xf32>
    %c288 = arith.constant 288 : index
    %c0_19 = arith.constant 0 : index
    %27 = vector.load %arg1[%c288, %c0_19] : memref<672x128xbf16, #tpu.memory_space<vmem>>, vector<160x128xbf16>
    %cst_20 = arith.constant dense<0.000000e+00> : vector<32x128xf32>
    %28 = tpu.matmul %0, %27, %cst_20 {dimension_numbers = #tpu.dot_dimension_numbers<[1], [0], [0], [1], [0, 0, 1, 1], [], []>} : vector<32x160xbf16>, vector<160x128xbf16>, vector<32x128xf32> -> vector<32x128xf32>
    %29 = arith.maximumf %26, %28 : vector<32x128xf32>
    %c320 = arith.constant 320 : index
    %c0_21 = arith.constant 0 : index
    %30 = vector.load %arg1[%c320, %c0_21] : memref<672x128xbf16, #tpu.memory_space<vmem>>, vector<160x128xbf16>
    %cst_22 = arith.constant dense<0.000000e+00> : vector<32x128xf32>
    %31 = tpu.matmul %0, %30, %cst_22 {dimension_numbers = #tpu.dot_dimension_numbers<[1], [0], [0], [1], [0, 0, 1, 1], [], []>} : vector<32x160xbf16>, vector<160x128xbf16>, vector<32x128xf32> -> vector<32x128xf32>
    %32 = arith.maximumf %29, %31 : vector<32x128xf32>
    %c352 = arith.constant 352 : index
    %c0_23 = arith.constant 0 : index
    %33 = vector.load %arg1[%c352, %c0_23] : memref<672x128xbf16, #tpu.memory_space<vmem>>, vector<160x128xbf16>
    %cst_24 = arith.constant dense<0.000000e+00> : vector<32x128xf32>
    %34 = tpu.matmul %0, %33, %cst_24 {dimension_numbers = #tpu.dot_dimension_numbers<[1], [0], [0], [1], [0, 0, 1, 1], [], []>} : vector<32x160xbf16>, vector<160x128xbf16>, vector<32x128xf32> -> vector<32x128xf32>
    %35 = arith.maximumf %32, %34 : vector<32x128xf32>
    %c384 = arith.constant 384 : index
    %c0_25 = arith.constant 0 : index
    %36 = vector.load %arg1[%c384, %c0_25] : memref<672x128xbf16, #tpu.memory_space<vmem>>, vector<160x128xbf16>
    %cst_26 = arith.constant dense<0.000000e+00> : vector<32x128xf32>
    %37 = tpu.matmul %0, %36, %cst_26 {dimension_numbers = #tpu.dot_dimension_numbers<[1], [0], [0], [1], [0, 0, 1, 1], [], []>} : vector<32x160xbf16>, vector<160x128xbf16>, vector<32x128xf32> -> vector<32x128xf32>
    %38 = arith.maximumf %35, %37 : vector<32x128xf32>
    %c416 = arith.constant 416 : index
    %c0_27 = arith.constant 0 : index
    %39 = vector.load %arg1[%c416, %c0_27] : memref<672x128xbf16, #tpu.memory_space<vmem>>, vector<160x128xbf16>
    %cst_28 = arith.constant dense<0.000000e+00> : vector<32x128xf32>
    %40 = tpu.matmul %0, %39, %cst_28 {dimension_numbers = #tpu.dot_dimension_numbers<[1], [0], [0], [1], [0, 0, 1, 1], [], []>} : vector<32x160xbf16>, vector<160x128xbf16>, vector<32x128xf32> -> vector<32x128xf32>
    %41 = arith.maximumf %38, %40 : vector<32x128xf32>
    %c448 = arith.constant 448 : index
    %c0_29 = arith.constant 0 : index
    %42 = vector.load %arg1[%c448, %c0_29] : memref<672x128xbf16, #tpu.memory_space<vmem>>, vector<160x128xbf16>
    %cst_30 = arith.constant dense<0.000000e+00> : vector<32x128xf32>
    %43 = tpu.matmul %0, %42, %cst_30 {dimension_numbers = #tpu.dot_dimension_numbers<[1], [0], [0], [1], [0, 0, 1, 1], [], []>} : vector<32x160xbf16>, vector<160x128xbf16>, vector<32x128xf32> -> vector<32x128xf32>
    %44 = arith.maximumf %41, %43 : vector<32x128xf32>
    %c480 = arith.constant 480 : index
    %c0_31 = arith.constant 0 : index
    %45 = vector.load %arg1[%c480, %c0_31] : memref<672x128xbf16, #tpu.memory_space<vmem>>, vector<160x128xbf16>
    %cst_32 = arith.constant dense<0.000000e+00> : vector<32x128xf32>
    %46 = tpu.matmul %0, %45, %cst_32 {dimension_numbers = #tpu.dot_dimension_numbers<[1], [0], [0], [1], [0, 0, 1, 1], [], []>} : vector<32x160xbf16>, vector<160x128xbf16>, vector<32x128xf32> -> vector<32x128xf32>
    %47 = arith.maximumf %44, %46 : vector<32x128xf32>
    %c512 = arith.constant 512 : index
    %c0_33 = arith.constant 0 : index
    %48 = vector.load %arg1[%c512, %c0_33] : memref<672x128xbf16, #tpu.memory_space<vmem>>, vector<160x128xbf16>
    %cst_34 = arith.constant dense<0.000000e+00> : vector<32x128xf32>
    %49 = tpu.matmul %0, %48, %cst_34 {dimension_numbers = #tpu.dot_dimension_numbers<[1], [0], [0], [1], [0, 0, 1, 1], [], []>} : vector<32x160xbf16>, vector<160x128xbf16>, vector<32x128xf32> -> vector<32x128xf32>
    %50 = arith.maximumf %47, %49 : vector<32x128xf32>
    %c0_35 = arith.constant 0 : index
    %c0_36 = arith.constant 0 : index
    %51 = vector.load %arg3[%c0_35, %c0_36] : memref<32x1xf32, #tpu.memory_space<vmem>>, vector<32x1xf32>
    %52 = vector.broadcast %51 : vector<32x1xf32> to vector<32x128xf32>
    %53 = arith.addf %50, %52 : vector<32x128xf32>
    %cst_37 = arith.constant 0.000000e+00 : f32
    %54 = vector.broadcast %cst_37 : f32 to vector<32x128xf32>
    %55 = arith.maximumf %53, %54 : vector<32x128xf32>
    %c0_38 = arith.constant 0 : index
    %c0_39 = arith.constant 0 : index
    %56 = vector.load %arg4[%c0_38, %c0_39] : memref<64x32xbf16, #tpu.memory_space<vmem>>, vector<64x32xbf16>
    %57 = arith.truncf %55 : vector<32x128xf32> to vector<32x128xbf16>
    %cst_40 = arith.constant dense<0.000000e+00> : vector<64x128xf32>
    %58 = tpu.matmul %56, %57, %cst_40 {dimension_numbers = #tpu.dot_dimension_numbers<[1], [0], [0], [1], [0, 0, 1, 1], [], []>} : vector<64x32xbf16>, vector<32x128xbf16>, vector<64x128xf32> -> vector<64x128xf32>
    %c0_41 = arith.constant 0 : index
    %c0_42 = arith.constant 0 : index
    %59 = vector.load %arg5[%c0_41, %c0_42] : memref<64x1xf32, #tpu.memory_space<vmem>>, vector<64x1xf32>
    %60 = vector.broadcast %59 : vector<64x1xf32> to vector<64x128xf32>
    %61 = arith.addf %58, %60 : vector<64x128xf32>
    %62 = vector.extract_strided_slice %61 {offsets = [0, 0], sizes = [32, 128], strides = [1, 1]} : vector<64x128xf32> to vector<32x128xf32>
    %cst_43 = arith.constant 0.000000e+00 : f32
    %63 = vector.broadcast %cst_43 : f32 to vector<32x128xf32>
    %64 = arith.maximumf %62, %63 : vector<32x128xf32>
    %65 = vector.extract_strided_slice %61 {offsets = [32, 0], sizes = [32, 128], strides = [1, 1]} : vector<64x128xf32> to vector<32x128xf32>
    %66 = arith.negf %65 : vector<32x128xf32>
    %67 = math.exp %66 : vector<32x128xf32>
    %cst_44 = arith.constant 1.000000e+00 : f32
    %68 = vector.broadcast %cst_44 : f32 to vector<32x128xf32>
    %69 = arith.addf %68, %67 : vector<32x128xf32>
    %70 = arith.divf %68, %69 : vector<32x128xf32>
    %71 = arith.mulf %70, %64 : vector<32x128xf32>
    %cst_45 = arith.constant 1.000000e+00 : f32
    %72 = vector.broadcast %cst_45 : f32 to vector<32x128xf32>
    %73 = arith.subf %72, %70 : vector<32x128xf32>
    %74 = arith.mulf %73, %55 : vector<32x128xf32>
    %75 = arith.addf %71, %74 : vector<32x128xf32>
    %c0_46 = arith.constant 0 : index
    %c0_47 = arith.constant 0 : index
    %76 = vector.load %arg6[%c0_46, %c0_47] : memref<32x128xf32, #tpu.memory_space<vmem>>, vector<32x128xf32>
    tpu.vector_store %arg6[%c0_46, %c0_47], %75 {strides = array<i32>} : memref<32x128xf32, #tpu.memory_space<vmem>>, vector<32x128xf32>,
    return
  }
  func.func @transform_0(%arg0: i32) -> (i32, i32) {
    %c0_i32 = arith.constant 0 : i32
    %c0_i32_0 = arith.constant 0 : i32
    return %c0_i32, %arg0 : i32, i32
  }
  func.func @transform_1(%arg0: i32) -> (i32, i32) {
    %c0_i32 = arith.constant 0 : i32
    %c0_i32_0 = arith.constant 0 : i32
    %c0_i32_1 = arith.constant 0 : i32
    return %c0_i32, %c0_i32_0 : i32, i32
  }
  func.func @transform_2(%arg0: i32) -> (i32, i32) {
    %c0_i32 = arith.constant 0 : i32
    %c0_i32_0 = arith.constant 0 : i32
    %c0_i32_1 = arith.constant 0 : i32
    return %c0_i32, %c0_i32_0 : i32, i32
  }
  func.func @transform_3(%arg0: i32) -> (i32, i32) {
    %c0_i32 = arith.constant 0 : i32
    %c0_i32_0 = arith.constant 0 : i32
    %c0_i32_1 = arith.constant 0 : i32
    return %c0_i32, %c0_i32_0 : i32, i32
  }
  func.func @transform_4(%arg0: i32) -> (i32, i32) {
    %c0_i32 = arith.constant 0 : i32
    %c0_i32_0 = arith.constant 0 : i32
    %c0_i32_1 = arith.constant 0 : i32
    return %c0_i32, %c0_i32_0 : i32, i32
  }
  func.func @transform_5(%arg0: i32) -> (i32, i32) {
    %c0_i32 = arith.constant 0 : i32
    %c0_i32_0 = arith.constant 0 : i32
    return %c0_i32, %arg0 : i32, i32
  }
}

</mosaic_0001>

<llo_original>
// kernel: tpu_custom_call.1
$region0: #{tpu_custom_call.1}
  #allocation0 [shape = 'u32[]', space=smem, size = 0x4, offset = 0x4, fixed_abs, tag = 'smem constant byte address 0x4 - core index']
  #allocation1 [shape = 'u32[144,128]{1,0:T(1,128)}', space=vmem, size = 0x12000, scoped, tag = 'internal scratch']
  %s0 = inlined_call_operand.hbm [shape: bf16[672,128], index: 0, kind: input, shape index: {}]
  %s1 = inlined_call_operand.vmem [shape: bf16[32,160], index: 1, kind: input, shape index: {}]
  %s2 = inlined_call_operand.vmem [shape: f32[32,1], index: 2, kind: input, shape index: {}]
  %s3 = inlined_call_operand.vmem [shape: bf16[64,32], index: 3, kind: input, shape index: {}]
  %s4 = inlined_call_operand.vmem [shape: f32[64,1], index: 4, kind: input, shape index: {}]
  %s5 = inlined_call_operand.hbm [shape: f32[32,128], index: 5, kind: output, shape index: {}]
  %s6 = sld [smem:[#allocation0]]
  $region34: #{tpu_custom_call.1} parent=0
    _
  %s8 = ssub.s32 1, %s6
  %s9 = scalar_select 0, %s8, %s6
  $region1: #{tpu_custom_call.1} parent=0
    #allocation2 [shape = 'u8[172032]{0}', space=vmem, size = 0x2a000, scoped, tag = 'input window, operand 0, single buffered']
    #allocation3 [shape = 's32[1]{0}', space=sflag, size = 0x4, scoped, tag = 'scoped memory for tpu_custom_call.1']
    #allocation4 [shape = 's32[1]{0}', space=sflag, size = 0x4, scoped, tag = 'scoped memory for tpu_custom_call.1']
    #allocation5 [shape = 'u8[16384]{0}', space=vmem, size = 0x4000, scoped, tag = 'output window, operand 0, single buffered']
    %10 = vsyncpa [#allocation3], 0
    %11 = vsyncpa [#allocation4], 0
    // Predicated region
    $region2: #{tpu_custom_call.1} parent=1 // pred_check
      _
    $region3: #{tpu_custom_call.1} parent=1 // pred_check_branch
      %13 = sbr.rel (0) target = $region5
    $region4: #{tpu_custom_call.1} parent=1 // pred_region
      %s15 = ssub.s32 5376, 5376
      %16 = vsyncadd [#allocation3], %s15
      %s17 = sshll.u32 [#allocation2], 4
      %s18 = int_to_ptr.vmem [resolvable:$true] %s17
      %23 = dma.hbm_to_vmem [thread:$0]  %s0, 5376, %s18, [#allocation3], 64, 64, 4
    $region5: #{tpu_custom_call.1} parent=1 // pred_fallthru
      _
    // Predicated region
    $region6: #{tpu_custom_call.1} parent=1 // pred_check
      _
    $region7: #{tpu_custom_call.1} parent=1 // pred_check_branch
      %25 = sbr.rel (0) target = $region9
    $region8: #{tpu_custom_call.1} parent=1 // pred_region
      _
    $region9: #{tpu_custom_call.1} parent=1 // pred_fallthru
      _
    // Predicated region
    $region10: #{tpu_custom_call.1} parent=1 // pred_check
      _
    $region11: #{tpu_custom_call.1} parent=1 // pred_check_branch
      %27 = sbr.rel (0) target = $region13
    $region12: #{tpu_custom_call.1} parent=1 // pred_region
      _
    $region13: #{tpu_custom_call.1} parent=1 // pred_fallthru
      _
    // Predicated region
    $region14: #{tpu_custom_call.1} parent=1 // pred_check
      _
    $region15: #{tpu_custom_call.1} parent=1 // pred_check_branch
      %29 = sbr.rel (0) target = $region17
    $region16: #{tpu_custom_call.1} parent=1 // pred_region
      _
    $region17: #{tpu_custom_call.1} parent=1 // pred_fallthru
      _
    // Predicated region
    $region18: #{tpu_custom_call.1} parent=1 // pred_check
      _
    $region19: #{tpu_custom_call.1} parent=1 // pred_check_branch
      %31 = sbr.rel (0) target = $region21
    $region20: #{tpu_custom_call.1} parent=1 // pred_region
      _
    $region21: #{tpu_custom_call.1} parent=1 // pred_fallthru
      _
    // Predicated region
    $region22: #{tpu_custom_call.1} parent=1 // pred_check
      _
    $region23: #{tpu_custom_call.1} parent=1 // pred_check_branch
      %33 = sbr.rel (0) target = $region25
    $region24: #{tpu_custom_call.1} parent=1 // pred_region
      %34 = dma.done [#allocation3], 5376
    $region25: #{tpu_custom_call.1} parent=1 // pred_fallthru
      _
    %v36 = vld [vmem:[%s1] sm:$0xff]
    %v37 = vld [vmem:[%s1 + $0x8] sm:$0xff]
    %v38 = vld [vmem:[%s1 + $0x10] sm:$0xff]
    %v39 = vld [vmem:[%s1 + $0x18] sm:$0xff]
    %v40 = vld [vmem:[#allocation2] sm:$0xf]
    %v41 = vld [vmem:[#allocation2 + $0x4] sm:$0xf]
    %v42 = vld [vmem:[#allocation2 + $0x8] sm:$0xf]
    %v43 = vld [vmem:[#allocation2 + $0xc] sm:$0xf]
    %v44 = vld [vmem:[#allocation2 + $0x10] sm:$0xf]
    %v45 = vld [vmem:[#allocation2 + $0x14] sm:$0xf]
    %v46 = vld [vmem:[#allocation2 + $0x18] sm:$0xf]
    %v47 = vld [vmem:[#allocation2 + $0x1c] sm:$0xf]
    %v48 = vld [vmem:[#allocation2 + $0x20] sm:$0xf]
    %v49 = vld [vmem:[#allocation2 + $0x24] sm:$0xf]
    %v50 = vld [vmem:[#allocation2 + $0x28] sm:$0xf]
    %v51 = vld [vmem:[#allocation2 + $0x2c] sm:$0xf]
    %v52 = vld [vmem:[#allocation2 + $0x30] sm:$0xf]
    %v53 = vld [vmem:[#allocation2 + $0x34] sm:$0xf]
    %v54 = vld [vmem:[#allocation2 + $0x38] sm:$0xf]
    %v55 = vld [vmem:[#allocation2 + $0x3c] sm:$0xf]
    %v56 = vld [vmem:[#allocation2 + $0x40] sm:$0xf]
    %v57 = vld [vmem:[#allocation2 + $0x44] sm:$0xf]
    %v58 = vld [vmem:[#allocation2 + $0x48] sm:$0xf]
    %v59 = vld [vmem:[#allocation2 + $0x4c] sm:$0xf]
    %v64 = vunpack.c.l.b16 %v36
    %v65 = vunpack.c.h.b16 %v36
    %v66 = vunpack.c.l.b16 %v37
    %v67 = vunpack.c.h.b16 %v37
    %v68 = vunpack.c.l.b16 %v38
    %v69 = vunpack.c.h.b16 %v38
    %v70 = vunpack.c.l.b16 %v39
    %v71 = vunpack.c.h.b16 %v39
    %v72 = vpack.c.b16 %v66, %v64
    %v73 = vpack.c.b16 %v67, %v65
    %v74 = vpack.c.b16 %v70, %v68
    %v75 = vpack.c.b16 %v71, %v69
    %v98 = vunpack.c.l.b16 %v40
    %v99 = vunpack.c.l.b16 %v41
    %v100 = vunpack.c.l.b16 %v42
    %v101 = vunpack.c.l.b16 %v43
    %v102 = vunpack.c.l.b16 %v44
    %v103 = vunpack.c.l.b16 %v45
    %v104 = vunpack.c.l.b16 %v46
    %v105 = vunpack.c.l.b16 %v47
    %v106 = vunpack.c.l.b16 %v48
    %v107 = vunpack.c.l.b16 %v49
    %v108 = vunpack.c.l.b16 %v50
    %v109 = vunpack.c.l.b16 %v51
    %v110 = vunpack.c.l.b16 %v52
    %v111 = vunpack.c.l.b16 %v53
    %v112 = vunpack.c.l.b16 %v54
    %v113 = vunpack.c.l.b16 %v55
    %v114 = vunpack.c.l.b16 %v56
    %v115 = vunpack.c.l.b16 %v57
    %v116 = vunpack.c.l.b16 %v58
    %v117 = vunpack.c.l.b16 %v59
    %v118 = vpack.c.b16 %v99, %v98
    %v119 = vpack.c.b16 %v101, %v100
    %v120 = vpack.c.b16 %v103, %v102
    %v121 = vpack.c.b16 %v105, %v104
    %v122 = vpack.c.b16 %v107, %v106
    %v123 = vpack.c.b16 %v109, %v108
    %v124 = vpack.c.b16 %v111, %v110
    %v125 = vpack.c.b16 %v113, %v112
    %v126 = vpack.c.b16 %v115, %v114
    %v127 = vpack.c.b16 %v117, %v116
    %vm138 = vcmask 261120
    %v140 = vsel %vm138, %v73, 0
    %v143 = vsel %vm138, %v75, 0
    %145 = vmatprep.subr.bf16.mxu0 0
    %146 = vmatpush1.bf16.msra.mxu0 %v118
    %147 = vmatprep.subr.bf16.mxu0 0
    %148 = vmatpush1.bf16.msra.mxu0 %v119
    %149 = vmatprep.subr.bf16.mxu0 0
    %150 = vmatpush1.bf16.msra.mxu0 %v120
    %151 = vmatprep.subr.bf16.mxu0 0
    %152 = vmatpush1.bf16.msra.mxu0 %v121
    %153 = vmatprep.subr.bf16.mxu0 0
    %154 = vmatpush1.bf16.msra.mxu0 %v122
    %155 = vmatprep.subr.bf16.mxu0 0
    %156 = vmatpush1.bf16.msra.mxu0 %v123
    %157 = vmatprep.subr.bf16.mxu0 0
    %158 = vmatpush1.bf16.msra.mxu0 %v124
    %159 = vmatprep.subr.bf16.mxu0 0
    %160 = vmatpush1.bf16.msra.mxu0 %v125
    %161 = vmatprep.subr.bf16.mxu0 0
    %162 = vmatpush1.bf16.msra.mxu0 %v126
    %163 = vmatprep.subr.bf16.mxu0 0
    %164 = vmatpush1.bf16.msra.mxu0 %v127
    %165 = vmatprep.subr.bf16.mxu0 0
    %166 = vmatpush1.bf16.msra.mxu0 0
    %167 = vmatprep.subr.bf16.mxu0 0
    %168 = vmatpush1.bf16.msra.mxu0 0
    %169 = vmatprep.subr.bf16.mxu0 0
    %170 = vmatpush1.bf16.msra.mxu0 0
    %171 = vmatprep.subr.bf16.mxu0 0
    %172 = vmatpush1.bf16.msra.mxu0 0
    %173 = vmatprep.subr.bf16.mxu0 0
    %174 = vmatpush1.bf16.msra.mxu0 0
    %175 = vmatprep.subr.bf16.mxu0 0
    %176 = vmatpush1.bf16.msra.mxu0 0
    %177 = vmatprep.mubr.bf16.mxu0 %v140
    %178 = vmatmul.mubr.bf16.gmra.mrb[0].mxu0 %v72
    %v179 = vpop.f32.mrb[0].mxu0
    %v180 = vadd.f32 0.0, %v179
    %v181 = vpop.f32.mrb[0].mxu0
    %v182 = vpop.f32.mrb[0].mxu0
    %v183 = vadd.f32 0.0, %v182
    %v184 = vpop.f32.mrb[0].mxu0
    %185 = vmatprep.mubr.bf16.mxu0 %v143
    %186 = vmatmul.mubr.bf16.gmra.mrb[0].mxu0 %v74
    %v187 = vpop.f32.mrb[0].mxu0
    %v188 = vadd.f32 0.0, %v187
    %v189 = vpop.f32.mrb[0].mxu0
    %v190 = vpop.f32.mrb[0].mxu0
    %v191 = vadd.f32 0.0, %v190
    %v192 = vpop.f32.mrb[0].mxu0
    %193 = vdwg.mxu0
    %v194 = vld [vmem:[#allocation2 + $0x10] sm:$0xf]
    %v195 = vld [vmem:[#allocation2 + $0x14] sm:$0xf]
    %v196 = vld [vmem:[#allocation2 + $0x18] sm:$0xf]
    %v197 = vld [vmem:[#allocation2 + $0x1c] sm:$0xf]
    %v198 = vld [vmem:[#allocation2 + $0x20] sm:$0xf]
    %v199 = vld [vmem:[#allocation2 + $0x24] sm:$0xf]
    %v200 = vld [vmem:[#allocation2 + $0x28] sm:$0xf]
    %v201 = vld [vmem:[#allocation2 + $0x2c] sm:$0xf]
    %v202 = vld [vmem:[#allocation2 + $0x30] sm:$0xf]
    %v203 = vld [vmem:[#allocation2 + $0x34] sm:$0xf]
    %v204 = vld [vmem:[#allocation2 + $0x38] sm:$0xf]
    %v205 = vld [vmem:[#allocation2 + $0x3c] sm:$0xf]
    %v206 = vld [vmem:[#allocation2 + $0x40] sm:$0xf]
    %v207 = vld [vmem:[#allocation2 + $0x44] sm:$0xf]
    %v208 = vld [vmem:[#allocation2 + $0x48] sm:$0xf]
    %v209 = vld [vmem:[#allocation2 + $0x4c] sm:$0xf]
    %v210 = vld [vmem:[#allocation2 + $0x50] sm:$0xf]
    %v211 = vld [vmem:[#allocation2 + $0x54] sm:$0xf]
    %v212 = vld [vmem:[#allocation2 + $0x58] sm:$0xf]
    %v213 = vld [vmem:[#allocation2 + $0x5c] sm:$0xf]
    %v234 = vunpack.c.l.b16 %v194
    %v235 = vunpack.c.l.b16 %v195
    %v236 = vunpack.c.l.b16 %v196
    %v237 = vunpack.c.l.b16 %v197
    %v238 = vunpack.c.l.b16 %v198
    %v239 = vunpack.c.l.b16 %v199
    %v240 = vunpack.c.l.b16 %v200
    %v241 = vunpack.c.l.b16 %v201
    %v242 = vunpack.c.l.b16 %v202
    %v243 = vunpack.c.l.b16 %v203
    %v244 = vunpack.c.l.b16 %v204
    %v245 = vunpack.c.l.b16 %v205
    %v246 = vunpack.c.l.b16 %v206
    %v247 = vunpack.c.l.b16 %v207
    %v248 = vunpack.c.l.b16 %v208
    %v249 = vunpack.c.l.b16 %v209
    %v250 = vunpack.c.l.b16 %v210
    %v251 = vunpack.c.l.b16 %v211
    %v252 = vunpack.c.l.b16 %v212
    %v253 = vunpack.c.l.b16 %v213
    %v254 = vpack.c.b16 %v235, %v234
    %v255 = vpack.c.b16 %v237, %v236
    %v256 = vpack.c.b16 %v239, %v238
    %v257 = vpack.c.b16 %v241, %v240
    %v258 = vpack.c.b16 %v243, %v242
    %v259 = vpack.c.b16 %v245, %v244
    %v260 = vpack.c.b16 %v247, %v246
    %v261 = vpack.c.b16 %v249, %v248
    %v262 = vpack.c.b16 %v251, %v250
    %v263 = vpack.c.b16 %v253, %v252
    %274 = vmatprep.subr.bf16.mxu0 0
    %275 = vmatpush1.bf16.msra.mxu0 %v254
    %276 = vmatprep.subr.bf16.mxu0 0
    %277 = vmatpush1.bf16.msra.mxu0 %v255
    %278 = vmatprep.subr.bf16.mxu0 0
    %279 = vmatpush1.bf16.msra.mxu0 %v256
    %280 = vmatprep.subr.bf16.mxu0 0
    %281 = vmatpush1.bf16.msra.mxu0 %v257
    %282 = vmatprep.subr.bf16.mxu0 0
    %283 = vmatpush1.bf16.msra.mxu0 %v258
    %284 = vmatprep.subr.bf16.mxu0 0
    %285 = vmatpush1.bf16.msra.mxu0 %v259
    %286 = vmatprep.subr.bf16.mxu0 0
    %287 = vmatpush1.bf16.msra.mxu0 %v260
    %288 = vmatprep.subr.bf16.mxu0 0
    %289 = vmatpush1.bf16.msra.mxu0 %v261
    %290 = vmatprep.subr.bf16.mxu0 0
    %291 = vmatpush1.bf16.msra.mxu0 %v262
    %292 = vmatprep.subr.bf16.mxu0 0
    %293 = vmatpush1.bf16.msra.mxu0 %v263
    %294 = vmatprep.subr.bf16.mxu0 0
    %295 = vmatpush1.bf16.msra.mxu0 0
    %296 = vmatprep.subr.bf16.mxu0 0
    %297 = vmatpush1.bf16.msra.mxu0 0
    %298 = vmatprep.subr.bf16.mxu0 0
    %299 = vmatpush1.bf16.msra.mxu0 0
    %300 = vmatprep.subr.bf16.mxu0 0
    %301 = vmatpush1.bf16.msra.mxu0 0
    %302 = vmatprep.subr.bf16.mxu0 0
    %303 = vmatpush1.bf16.msra.mxu0 0
    %304 = vmatprep.subr.bf16.mxu0 0
    %305 = vmatpush1.bf16.msra.mxu0 0
    %306 = vmatprep.mubr.bf16.mxu0 %v140
    %307 = vmatmul.mubr.bf16.gmra.mrb[0].mxu0 %v72
    %v308 = vpop.f32.mrb[0].mxu0
    %v309 = vadd.f32 0.0, %v308
    %v310 = vpop.f32.mrb[0].mxu0
    %v311 = vpop.f32.mrb[0].mxu0
    %v312 = vadd.f32 0.0, %v311
    %v313 = vpop.f32.mrb[0].mxu0
    %314 = vmatprep.mubr.bf16.mxu0 %v143
    %315 = vmatmul.mubr.bf16.gmra.mrb[0].mxu0 %v74
    %v316 = vpop.f32.mrb[0].mxu0
    %v317 = vadd.f32 0.0, %v316
    %v318 = vpop.f32.mrb[0].mxu0
    %v319 = vpop.f32.mrb[0].mxu0
    %v320 = vadd.f32 0.0, %v319
    %v321 = vpop.f32.mrb[0].mxu0
    %322 = vdwg.mxu0
    %v323 = vmax.f32 %v180, %v309
    %v324 = vmax.f32 %v183, %v312
    %v325 = vmax.f32 %v188, %v317
    %v326 = vmax.f32 %v191, %v320
    %v327 = vld [vmem:[#allocation2 + $0x20] sm:$0xf]
    %v328 = vld [vmem:[#allocation2 + $0x24] sm:$0xf]
    %v329 = vld [vmem:[#allocation2 + $0x28] sm:$0xf]
    %v330 = vld [vmem:[#allocation2 + $0x2c] sm:$0xf]
    %v331 = vld [vmem:[#allocation2 + $0x30] sm:$0xf]
    %v332 = vld [vmem:[#allocation2 + $0x34] sm:$0xf]
    %v333 = vld [vmem:[#allocation2 + $0x38] sm:$0xf]
    %v334 = vld [vmem:[#allocation2 + $0x3c] sm:$0xf]
    %v335 = vld [vmem:[#allocation2 + $0x40] sm:$0xf]
    %v336 = vld [vmem:[#allocation2 + $0x44] sm:$0xf]
    %v337 = vld [vmem:[#allocation2 + $0x48] sm:$0xf]
    %v338 = vld [vmem:[#allocation2 + $0x4c] sm:$0xf]
    %v339 = vld [vmem:[#allocation2 + $0x50] sm:$0xf]
    %v340 = vld [vmem:[#allocation2 + $0x54] sm:$0xf]
    %v341 = vld [vmem:[#allocation2 + $0x58] sm:$0xf]
    %v342 = vld [vmem:[#allocation2 + $0x5c] sm:$0xf]
    %v343 = vld [vmem:[#allocation2 + $0x60] sm:$0xf]
    %v344 = vld [vmem:[#allocation2 + $0x64] sm:$0xf]
    %v345 = vld [vmem:[#allocation2 + $0x68] sm:$0xf]
    %v346 = vld [vmem:[#allocation2 + $0x6c] sm:$0xf]
    %v367 = vunpack.c.l.b16 %v327
    %v368 = vunpack.c.l.b16 %v328
    %v369 = vunpack.c.l.b16 %v329
    %v370 = vunpack.c.l.b16 %v330
    %v371 = vunpack.c.l.b16 %v331
    %v372 = vunpack.c.l.b16 %v332
    %v373 = vunpack.c.l.b16 %v333
    %v374 = vunpack.c.l.b16 %v334
    %v375 = vunpack.c.l.b16 %v335
    %v376 = vunpack.c.l.b16 %v336
    %v377 = vunpack.c.l.b16 %v337
    %v378 = vunpack.c.l.b16 %v338
    %v379 = vunpack.c.l.b16 %v339
    %v380 = vunpack.c.l.b16 %v340
    %v381 = vunpack.c.l.b16 %v341
    %v382 = vunpack.c.l.b16 %v342
    %v383 = vunpack.c.l.b16 %v343
    %v384 = vunpack.c.l.b16 %v344
    %v385 = vunpack.c.l.b16 %v345
    %v386 = vunpack.c.l.b16 %v346
    %v387 = vpack.c.b16 %v368, %v367
    %v388 = vpack.c.b16 %v370, %v369
    %v389 = vpack.c.b16 %v372, %v371
    %v390 = vpack.c.b16 %v374, %v373
    %v391 = vpack.c.b16 %v376, %v375
    %v392 = vpack.c.b16 %v378, %v377
    %v393 = vpack.c.b16 %v380, %v379
    %v394 = vpack.c.b16 %v382, %v381
    %v395 = vpack.c.b16 %v384, %v383
    %v396 = vpack.c.b16 %v386, %v385
    %407 = vmatprep.subr.bf16.mxu0 0
    %408 = vmatpush1.bf16.msra.mxu0 %v387
    %409 = vmatprep.subr.bf16.mxu0 0
    %410 = vmatpush1.bf16.msra.mxu0 %v388
    %411 = vmatprep.subr.bf16.mxu0 0
    %412 = vmatpush1.bf16.msra.mxu0 %v389
    %413 = vmatprep.subr.bf16.mxu0 0
    %414 = vmatpush1.bf16.msra.mxu0 %v390
    %415 = vmatprep.subr.bf16.mxu0 0
    %416 = vmatpush1.bf16.msra.mxu0 %v391
    %417 = vmatprep.subr.bf16.mxu0 0
    %418 = vmatpush1.bf16.msra.mxu0 %v392
    %419 = vmatprep.subr.bf16.mxu0 0
    %420 = vmatpush1.bf16.msra.mxu0 %v393
    %421 = vmatprep.subr.bf16.mxu0 0
    %422 = vmatpush1.bf16.msra.mxu0 %v394
    %423 = vmatprep.subr.bf16.mxu0 0
    %424 = vmatpush1.bf16.msra.mxu0 %v395
    %425 = vmatprep.subr.bf16.mxu0 0
    %426 = vmatpush1.bf16.msra.mxu0 %v396
    %427 = vmatprep.subr.bf16.mxu0 0
    %428 = vmatpush1.bf16.msra.mxu0 0
    %429 = vmatprep.subr.bf16.mxu0 0
    %430 = vmatpush1.bf16.msra.mxu0 0
    %431 = vmatprep.subr.bf16.mxu0 0
    %432 = vmatpush1.bf16.msra.mxu0 0
    %433 = vmatprep.subr.bf16.mxu0 0
    %434 = vmatpush1.bf16.msra.mxu0 0
    %435 = vmatprep.subr.bf16.mxu0 0
    %436 = vmatpush1.bf16.msra.mxu0 0
    %437 = vmatprep.subr.bf16.mxu0 0
    %438 = vmatpush1.bf16.msra.mxu0 0
    %439 = vmatprep.mubr.bf16.mxu0 %v140
    %440 = vmatmul.mubr.bf16.gmra.mrb[0].mxu0 %v72
    %v441 = vpop.f32.mrb[0].mxu0
    %v442 = vadd.f32 0.0, %v441
    %v443 = vpop.f32.mrb[0].mxu0
    %v444 = vpop.f32.mrb[0].mxu0
    %v445 = vadd.f32 0.0, %v444
    %v446 = vpop.f32.mrb[0].mxu0
    %447 = vmatprep.mubr.bf16.mxu0 %v143
    %448 = vmatmul.mubr.bf16.gmra.mrb[0].mxu0 %v74
    %v449 = vpop.f32.mrb[0].mxu0
    %v450 = vadd.f32 0.0, %v449
    %v451 = vpop.f32.mrb[0].mxu0
    %v452 = vpop.f32.mrb[0].mxu0
    %v453 = vadd.f32 0.0, %v452
    %v454 = vpop.f32.mrb[0].mxu0
    %455 = vdwg.mxu0
    %v456 = vmax.f32 %v323, %v442
    %v457 = vmax.f32 %v324, %v445
    %v458 = vmax.f32 %v325, %v450
    %v459 = vmax.f32 %v326, %v453
    %v460 = vld [vmem:[#allocation2 + $0x30] sm:$0xf]
    %v461 = vld [vmem:[#allocation2 + $0x34] sm:$0xf]
    %v462 = vld [vmem:[#allocation2 + $0x38] sm:$0xf]
    %v463 = vld [vmem:[#allocation2 + $0x3c] sm:$0xf]
    %v464 = vld [vmem:[#allocation2 + $0x40] sm:$0xf]
    %v465 = vld [vmem:[#allocation2 + $0x44] sm:$0xf]
    %v466 = vld [vmem:[#allocation2 + $0x48] sm:$0xf]
    %v467 = vld [vmem:[#allocation2 + $0x4c] sm:$0xf]
    %v468 = vld [vmem:[#allocation2 + $0x50] sm:$0xf]
    %v469 = vld [vmem:[#allocation2 + $0x54] sm:$0xf]
    %v470 = vld [vmem:[#allocation2 + $0x58] sm:$0xf]
    %v471 = vld [vmem:[#allocation2 + $0x5c] sm:$0xf]
    %v472 = vld [vmem:[#allocation2 + $0x60] sm:$0xf]
    %v473 = vld [vmem:[#allocation2 + $0x64] sm:$0xf]
    %v474 = vld [vmem:[#allocation2 + $0x68] sm:$0xf]
    %v475 = vld [vmem:[#allocation2 + $0x6c] sm:$0xf]
    %v476 = vld [vmem:[#allocation2 + $0x70] sm:$0xf]
    %v477 = vld [vmem:[#allocation2 + $0x74] sm:$0xf]
    %v478 = vld [vmem:[#allocation2 + $0x78] sm:$0xf]
    %v479 = vld [vmem:[#allocation2 + $0x7c] sm:$0xf]
    %v500 = vunpack.c.l.b16 %v460
    %v501 = vunpack.c.l.b16 %v461
    %v502 = vunpack.c.l.b16 %v462
    %v503 = vunpack.c.l.b16 %v463
    %v504 = vunpack.c.l.b16 %v464
    %v505 = vunpack.c.l.b16 %v465
    %v506 = vunpack.c.l.b16 %v466
    %v507 = vunpack.c.l.b16 %v467
    %v508 = vunpack.c.l.b16 %v468
    %v509 = vunpack.c.l.b16 %v469
    %v510 = vunpack.c.l.b16 %v470
    %v511 = vunpack.c.l.b16 %v471
    %v512 = vunpack.c.l.b16 %v472
    %v513 = vunpack.c.l.b16 %v473
    %v514 = vunpack.c.l.b16 %v474
    %v515 = vunpack.c.l.b16 %v475
    %v516 = vunpack.c.l.b16 %v476
    %v517 = vunpack.c.l.b16 %v477
    %v518 = vunpack.c.l.b16 %v478
    %v519 = vunpack.c.l.b16 %v479
    %v520 = vpack.c.b16 %v501, %v500
    %v521 = vpack.c.b16 %v503, %v502
    %v522 = vpack.c.b16 %v505, %v504
    %v523 = vpack.c.b16 %v507, %v506
    %v524 = vpack.c.b16 %v509, %v508
    %v525 = vpack.c.b16 %v511, %v510
    %v526 = vpack.c.b16 %v513, %v512
    %v527 = vpack.c.b16 %v515, %v514
    %v528 = vpack.c.b16 %v517, %v516
    %v529 = vpack.c.b16 %v519, %v518
    %540 = vmatprep.subr.bf16.mxu0 0
    %541 = vmatpush1.bf16.msra.mxu0 %v520
    %542 = vmatprep.subr.bf16.mxu0 0
    %543 = vmatpush1.bf16.msra.mxu0 %v521
    %544 = vmatprep.subr.bf16.mxu0 0
    %545 = vmatpush1.bf16.msra.mxu0 %v522
    %546 = vmatprep.subr.bf16.mxu0 0
    %547 = vmatpush1.bf16.msra.mxu0 %v523
    %548 = vmatprep.subr.bf16.mxu0 0
    %549 = vmatpush1.bf16.msra.mxu0 %v524
    %550 = vmatprep.subr.bf16.mxu0 0
    %551 = vmatpush1.bf16.msra.mxu0 %v525
    %552 = vmatprep.subr.bf16.mxu0 0
    %553 = vmatpush1.bf16.msra.mxu0 %v526
    %554 = vmatprep.subr.bf16.mxu0 0
    %555 = vmatpush1.bf16.msra.mxu0 %v527
    %556 = vmatprep.subr.bf16.mxu0 0
    %557 = vmatpush1.bf16.msra.mxu0 %v528
    %558 = vmatprep.subr.bf16.mxu0 0
    %559 = vmatpush1.bf16.msra.mxu0 %v529
    %560 = vmatprep.subr.bf16.mxu0 0
    %561 = vmatpush1.bf16.msra.mxu0 0
    %562 = vmatprep.subr.bf16.mxu0 0
    %563 = vmatpush1.bf16.msra.mxu0 0
    %564 = vmatprep.subr.bf16.mxu0 0
    %565 = vmatpush1.bf16.msra.mxu0 0
    %566 = vmatprep.subr.bf16.mxu0 0
    %567 = vmatpush1.bf16.msra.mxu0 0
    %568 = vmatprep.subr.bf16.mxu0 0
    %569 = vmatpush1.bf16.msra.mxu0 0
    %570 = vmatprep.subr.bf16.mxu0 0
    %571 = vmatpush1.bf16.msra.mxu0 0
    %572 = vmatprep.mubr.bf16.mxu0 %v140
    %573 = vmatmul.mubr.bf16.gmra.mrb[0].mxu0 %v72
    %v574 = vpop.f32.mrb[0].mxu0
    %v575 = vadd.f32 0.0, %v574
    %v576 = vpop.f32.mrb[0].mxu0
    %v577 = vpop.f32.mrb[0].mxu0
    %v578 = vadd.f32 0.0, %v577
    %v579 = vpop.f32.mrb[0].mxu0
    %580 = vmatprep.mubr.bf16.mxu0 %v143
    %581 = vmatmul.mubr.bf16.gmra.mrb[0].mxu0 %v74
    %v582 = vpop.f32.mrb[0].mxu0
    %v583 = vadd.f32 0.0, %v582
    %v584 = vpop.f32.mrb[0].mxu0
    %v585 = vpop.f32.mrb[0].mxu0
    %v586 = vadd.f32 0.0, %v585
    %v587 = vpop.f32.mrb[0].mxu0
    %588 = vdwg.mxu0
    %v589 = vmax.f32 %v456, %v575
    %v590 = vmax.f32 %v457, %v578
    %v591 = vmax.f32 %v458, %v583
    %v592 = vmax.f32 %v459, %v586
    %v593 = vld [vmem:[#allocation2 + $0x40] sm:$0xf]
    %v594 = vld [vmem:[#allocation2 + $0x44] sm:$0xf]
    %v595 = vld [vmem:[#allocation2 + $0x48] sm:$0xf]
    %v596 = vld [vmem:[#allocation2 + $0x4c] sm:$0xf]
    %v597 = vld [vmem:[#allocation2 + $0x50] sm:$0xf]
    %v598 = vld [vmem:[#allocation2 + $0x54] sm:$0xf]
    %v599 = vld [vmem:[#allocation2 + $0x58] sm:$0xf]
    %v600 = vld [vmem:[#allocation2 + $0x5c] sm:$0xf]
    %v601 = vld [vmem:[#allocation2 + $0x60] sm:$0xf]
    %v602 = vld [vmem:[#allocation2 + $0x64] sm:$0xf]
    %v603 = vld [vmem:[#allocation2 + $0x68] sm:$0xf]
    %v604 = vld [vmem:[#allocation2 + $0x6c] sm:$0xf]
    %v605 = vld [vmem:[#allocation2 + $0x70] sm:$0xf]
    %v606 = vld [vmem:[#allocation2 + $0x74] sm:$0xf]
    %v607 = vld [vmem:[#allocation2 + $0x78] sm:$0xf]
    %v608 = vld [vmem:[#allocation2 + $0x7c] sm:$0xf]
    %v609 = vld [vmem:[#allocation2 + $0x80] sm:$0xf]
    %v610 = vld [vmem:[#allocation2 + $0x84] sm:$0xf]
    %v611 = vld [vmem:[#allocation2 + $0x88] sm:$0xf]
    %v612 = vld [vmem:[#allocation2 + $0x8c] sm:$0xf]
    %v633 = vunpack.c.l.b16 %v593
    %v634 = vunpack.c.l.b16 %v594
    %v635 = vunpack.c.l.b16 %v595
    %v636 = vunpack.c.l.b16 %v596
    %v637 = vunpack.c.l.b16 %v597
    %v638 = vunpack.c.l.b16 %v598
    %v639 = vunpack.c.l.b16 %v599
    %v640 = vunpack.c.l.b16 %v600
    %v641 = vunpack.c.l.b16 %v601
    %v642 = vunpack.c.l.b16 %v602
    %v643 = vunpack.c.l.b16 %v603
    %v644 = vunpack.c.l.b16 %v604
    %v645 = vunpack.c.l.b16 %v605
    %v646 = vunpack.c.l.b16 %v606
    %v647 = vunpack.c.l.b16 %v607
    %v648 = vunpack.c.l.b16 %v608
    %v649 = vunpack.c.l.b16 %v609
    %v650 = vunpack.c.l.b16 %v610
    %v651 = vunpack.c.l.b16 %v611
    %v652 = vunpack.c.l.b16 %v612
    %v653 = vpack.c.b16 %v634, %v633
    %v654 = vpack.c.b16 %v636, %v635
    %v655 = vpack.c.b16 %v638, %v637
    %v656 = vpack.c.b16 %v640, %v639
    %v657 = vpack.c.b16 %v642, %v641
    %v658 = vpack.c.b16 %v644, %v643
    %v659 = vpack.c.b16 %v646, %v645
    %v660 = vpack.c.b16 %v648, %v647
    %v661 = vpack.c.b16 %v650, %v649
    %v662 = vpack.c.b16 %v652, %v651
    %673 = vmatprep.subr.bf16.mxu0 0
    %674 = vmatpush1.bf16.msra.mxu0 %v653
    %675 = vmatprep.subr.bf16.mxu0 0
    %676 = vmatpush1.bf16.msra.mxu0 %v654
    %677 = vmatprep.subr.bf16.mxu0 0
    %678 = vmatpush1.bf16.msra.mxu0 %v655
    %679 = vmatprep.subr.bf16.mxu0 0
    %680 = vmatpush1.bf16.msra.mxu0 %v656
    %681 = vmatprep.subr.bf16.mxu0 0
    %682 = vmatpush1.bf16.msra.mxu0 %v657
    %683 = vmatprep.subr.bf16.mxu0 0
    %684 = vmatpush1.bf16.msra.mxu0 %v658
    %685 = vmatprep.subr.bf16.mxu0 0
    %686 = vmatpush1.bf16.msra.mxu0 %v659
    %687 = vmatprep.subr.bf16.mxu0 0
    %688 = vmatpush1.bf16.msra.mxu0 %v660
    %689 = vmatprep.subr.bf16.mxu0 0
    %690 = vmatpush1.bf16.msra.mxu0 %v661
    %691 = vmatprep.subr.bf16.mxu0 0
    %692 = vmatpush1.bf16.msra.mxu0 %v662
    %693 = vmatprep.subr.bf16.mxu0 0
    %694 = vmatpush1.bf16.msra.mxu0 0
    %695 = vmatprep.subr.bf16.mxu0 0
    %696 = vmatpush1.bf16.msra.mxu0 0
    %697 = vmatprep.subr.bf16.mxu0 0
    %698 = vmatpush1.bf16.msra.mxu0 0
    %699 = vmatprep.subr.bf16.mxu0 0
    %700 = vmatpush1.bf16.msra.mxu0 0
    %701 = vmatprep.subr.bf16.mxu0 0
    %702 = vmatpush1.bf16.msra.mxu0 0
    %703 = vmatprep.subr.bf16.mxu0 0
    %704 = vmatpush1.bf16.msra.mxu0 0
    %705 = vmatprep.mubr.bf16.mxu0 %v140
    %706 = vmatmul.mubr.bf16.gmra.mrb[0].mxu0 %v72
    %v707 = vpop.f32.mrb[0].mxu0
    %v708 = vadd.f32 0.0, %v707
    %v709 = vpop.f32.mrb[0].mxu0
    %v710 = vpop.f32.mrb[0].mxu0
    %v711 = vadd.f32 0.0, %v710
    %v712 = vpop.f32.mrb[0].mxu0
    %713 = vmatprep.mubr.bf16.mxu0 %v143
    %714 = vmatmul.mubr.bf16.gmra.mrb[0].mxu0 %v74
    %v715 = vpop.f32.mrb[0].mxu0
    %v716 = vadd.f32 0.0, %v715
    %v717 = vpop.f32.mrb[0].mxu0
    %v718 = vpop.f32.mrb[0].mxu0
    %v719 = vadd.f32 0.0, %v718
    %v720 = vpop.f32.mrb[0].mxu0
    %721 = vdwg.mxu0
    %v722 = vmax.f32 %v589, %v708
    %v723 = vmax.f32 %v590, %v711
    %v724 = vmax.f32 %v591, %v716
    %v725 = vmax.f32 %v592, %v719
    %v726 = vld [vmem:[#allocation2 + $0x50] sm:$0xf]
    %v727 = vld [vmem:[#allocation2 + $0x54] sm:$0xf]
    %v728 = vld [vmem:[#allocation2 + $0x58] sm:$0xf]
    %v729 = vld [vmem:[#allocation2 + $0x5c] sm:$0xf]
    %v730 = vld [vmem:[#allocation2 + $0x60] sm:$0xf]
    %v731 = vld [vmem:[#allocation2 + $0x64] sm:$0xf]
    %v732 = vld [vmem:[#allocation2 + $0x68] sm:$0xf]
    %v733 = vld [vmem:[#allocation2 + $0x6c] sm:$0xf]
    %v734 = vld [vmem:[#allocation2 + $0x70] sm:$0xf]
    %v735 = vld [vmem:[#allocation2 + $0x74] sm:$0xf]
    %v736 = vld [vmem:[#allocation2 + $0x78] sm:$0xf]
    %v737 = vld [vmem:[#allocation2 + $0x7c] sm:$0xf]
    %v738 = vld [vmem:[#allocation2 + $0x80] sm:$0xf]
    %v739 = vld [vmem:[#allocation2 + $0x84] sm:$0xf]
    %v740 = vld [vmem:[#allocation2 + $0x88] sm:$0xf]
    %v741 = vld [vmem:[#allocation2 + $0x8c] sm:$0xf]
    %v742 = vld [vmem:[#allocation2 + $0x90] sm:$0xf]
    %v743 = vld [vmem:[#allocation2 + $0x94] sm:$0xf]
    %v744 = vld [vmem:[#allocation2 + $0x98] sm:$0xf]
    %v745 = vld [vmem:[#allocation2 + $0x9c] sm:$0xf]
    %v766 = vunpack.c.l.b16 %v726
    %v767 = vunpack.c.l.b16 %v727
    %v768 = vunpack.c.l.b16 %v728
    %v769 = vunpack.c.l.b16 %v729
    %v770 = vunpack.c.l.b16 %v730
    %v771 = vunpack.c.l.b16 %v731
    %v772 = vunpack.c.l.b16 %v732
    %v773 = vunpack.c.l.b16 %v733
    %v774 = vunpack.c.l.b16 %v734
    %v775 = vunpack.c.l.b16 %v735
    %v776 = vunpack.c.l.b16 %v736
    %v777 = vunpack.c.l.b16 %v737
    %v778 = vunpack.c.l.b16 %v738
    %v779 = vunpack.c.l.b16 %v739
    %v780 = vunpack.c.l.b16 %v740
    %v781 = vunpack.c.l.b16 %v741
    %v782 = vunpack.c.l.b16 %v742
    %v783 = vunpack.c.l.b16 %v743
    %v784 = vunpack.c.l.b16 %v744
    %v785 = vunpack.c.l.b16 %v745
    %v786 = vpack.c.b16 %v767, %v766
    %v787 = vpack.c.b16 %v769, %v768
    %v788 = vpack.c.b16 %v771, %v770
    %v789 = vpack.c.b16 %v773, %v772
    %v790 = vpack.c.b16 %v775, %v774
    %v791 = vpack.c.b16 %v777, %v776
    %v792 = vpack.c.b16 %v779, %v778
    %v793 = vpack.c.b16 %v781, %v780
    %v794 = vpack.c.b16 %v783, %v782
    %v795 = vpack.c.b16 %v785, %v784
    %806 = vmatprep.subr.bf16.mxu0 0
    %807 = vmatpush1.bf16.msra.mxu0 %v786
    %808 = vmatprep.subr.bf16.mxu0 0
    %809 = vmatpush1.bf16.msra.mxu0 %v787
    %810 = vmatprep.subr.bf16.mxu0 0
    %811 = vmatpush1.bf16.msra.mxu0 %v788
    %812 = vmatprep.subr.bf16.mxu0 0
    %813 = vmatpush1.bf16.msra.mxu0 %v789
    %814 = vmatprep.subr.bf16.mxu0 0
    %815 = vmatpush1.bf16.msra.mxu0 %v790
    %816 = vmatprep.subr.bf16.mxu0 0
    %817 = vmatpush1.bf16.msra.mxu0 %v791
    %818 = vmatprep.subr.bf16.mxu0 0
    %819 = vmatpush1.bf16.msra.mxu0 %v792
    %820 = vmatprep.subr.bf16.mxu0 0
    %821 = vmatpush1.bf16.msra.mxu0 %v793
    %822 = vmatprep.subr.bf16.mxu0 0
    %823 = vmatpush1.bf16.msra.mxu0 %v794
    %824 = vmatprep.subr.bf16.mxu0 0
    %825 = vmatpush1.bf16.msra.mxu0 %v795
    %826 = vmatprep.subr.bf16.mxu0 0
    %827 = vmatpush1.bf16.msra.mxu0 0
    %828 = vmatprep.subr.bf16.mxu0 0
    %829 = vmatpush1.bf16.msra.mxu0 0
    %830 = vmatprep.subr.bf16.mxu0 0
    %831 = vmatpush1.bf16.msra.mxu0 0
    %832 = vmatprep.subr.bf16.mxu0 0
    %833 = vmatpush1.bf16.msra.mxu0 0
    %834 = vmatprep.subr.bf16.mxu0 0
    %835 = vmatpush1.bf16.msra.mxu0 0
    %836 = vmatprep.subr.bf16.mxu0 0
    %837 = vmatpush1.bf16.msra.mxu0 0
    %838 = vmatprep.mubr.bf16.mxu0 %v140
    %839 = vmatmul.mubr.bf16.gmra.mrb[0].mxu0 %v72
    %v840 = vpop.f32.mrb[0].mxu0
    %v841 = vadd.f32 0.0, %v840
    %v842 = vpop.f32.mrb[0].mxu0
    %v843 = vpop.f32.mrb[0].mxu0
    %v844 = vadd.f32 0.0, %v843
    %v845 = vpop.f32.mrb[0].mxu0
    %846 = vmatprep.mubr.bf16.mxu0 %v143
    %847 = vmatmul.mubr.bf16.gmra.mrb[0].mxu0 %v74
    %v848 = vpop.f32.mrb[0].mxu0
    %v849 = vadd.f32 0.0, %v848
    %v850 = vpop.f32.mrb[0].mxu0
    %v851 = vpop.f32.mrb[0].mxu0
    %v852 = vadd.f32 0.0, %v851
    %v853 = vpop.f32.mrb[0].mxu0
    %854 = vdwg.mxu0
    %v855 = vmax.f32 %v722, %v841
    %v856 = vmax.f32 %v723, %v844
    %v857 = vmax.f32 %v724, %v849
    %v858 = vmax.f32 %v725, %v852
    %v859 = vld [vmem:[#allocation2 + $0x60] sm:$0xf]
    %v860 = vld [vmem:[#allocation2 + $0x64] sm:$0xf]
    %v861 = vld [vmem:[#allocation2 + $0x68] sm:$0xf]
    %v862 = vld [vmem:[#allocation2 + $0x6c] sm:$0xf]
    %v863 = vld [vmem:[#allocation2 + $0x70] sm:$0xf]
    %v864 = vld [vmem:[#allocation2 + $0x74] sm:$0xf]
    %v865 = vld [vmem:[#allocation2 + $0x78] sm:$0xf]
    %v866 = vld [vmem:[#allocation2 + $0x7c] sm:$0xf]
    %v867 = vld [vmem:[#allocation2 + $0x80] sm:$0xf]
    %v868 = vld [vmem:[#allocation2 + $0x84] sm:$0xf]
    %v869 = vld [vmem:[#allocation2 + $0x88] sm:$0xf]
    %v870 = vld [vmem:[#allocation2 + $0x8c] sm:$0xf]
    %v871 = vld [vmem:[#allocation2 + $0x90] sm:$0xf]
    %v872 = vld [vmem:[#allocation2 + $0x94] sm:$0xf]
    %v873 = vld [vmem:[#allocation2 + $0x98] sm:$0xf]
    %v874 = vld [vmem:[#allocation2 + $0x9c] sm:$0xf]
    %v875 = vld [vmem:[#allocation2 + $0xa0] sm:$0xf]
    %v876 = vld [vmem:[#allocation2 + $0xa4] sm:$0xf]
    %v877 = vld [vmem:[#allocation2 + $0xa8] sm:$0xf]
    %v878 = vld [vmem:[#allocation2 + $0xac] sm:$0xf]
    %v899 = vunpack.c.l.b16 %v859
    %v900 = vunpack.c.l.b16 %v860
    %v901 = vunpack.c.l.b16 %v861
    %v902 = vunpack.c.l.b16 %v862
    %v903 = vunpack.c.l.b16 %v863
    %v904 = vunpack.c.l.b16 %v864
    %v905 = vunpack.c.l.b16 %v865
    %v906 = vunpack.c.l.b16 %v866
    %v907 = vunpack.c.l.b16 %v867
    %v908 = vunpack.c.l.b16 %v868
    %v909 = vunpack.c.l.b16 %v869
    %v910 = vunpack.c.l.b16 %v870
    %v911 = vunpack.c.l.b16 %v871
    %v912 = vunpack.c.l.b16 %v872
    %v913 = vunpack.c.l.b16 %v873
    %v914 = vunpack.c.l.b16 %v874
    %v915 = vunpack.c.l.b16 %v875
    %v916 = vunpack.c.l.b16 %v876
    %v917 = vunpack.c.l.b16 %v877
    %v918 = vunpack.c.l.b16 %v878
    %v919 = vpack.c.b16 %v900, %v899
    %v920 = vpack.c.b16 %v902, %v901
    %v921 = vpack.c.b16 %v904, %v903
    %v922 = vpack.c.b16 %v906, %v905
    %v923 = vpack.c.b16 %v908, %v907
    %v924 = vpack.c.b16 %v910, %v909
    %v925 = vpack.c.b16 %v912, %v911
    %v926 = vpack.c.b16 %v914, %v913
    %v927 = vpack.c.b16 %v916, %v915
    %v928 = vpack.c.b16 %v918, %v917
    %939 = vmatprep.subr.bf16.mxu0 0
    %940 = vmatpush1.bf16.msra.mxu0 %v919
    %941 = vmatprep.subr.bf16.mxu0 0
    %942 = vmatpush1.bf16.msra.mxu0 %v920
    %943 = vmatprep.subr.bf16.mxu0 0
    %944 = vmatpush1.bf16.msra.mxu0 %v921
    %945 = vmatprep.subr.bf16.mxu0 0
    %946 = vmatpush1.bf16.msra.mxu0 %v922
    %947 = vmatprep.subr.bf16.mxu0 0
    %948 = vmatpush1.bf16.msra.mxu0 %v923
    %949 = vmatprep.subr.bf16.mxu0 0
    %950 = vmatpush1.bf16.msra.mxu0 %v924
    %951 = vmatprep.subr.bf16.mxu0 0
    %952 = vmatpush1.bf16.msra.mxu0 %v925
    %953 = vmatprep.subr.bf16.mxu0 0
    %954 = vmatpush1.bf16.msra.mxu0 %v926
    %955 = vmatprep.subr.bf16.mxu0 0
    %956 = vmatpush1.bf16.msra.mxu0 %v927
    %957 = vmatprep.subr.bf16.mxu0 0
    %958 = vmatpush1.bf16.msra.mxu0 %v928
    %959 = vmatprep.subr.bf16.mxu0 0
    %960 = vmatpush1.bf16.msra.mxu0 0
    %961 = vmatprep.subr.bf16.mxu0 0
    %962 = vmatpush1.bf16.msra.mxu0 0
    %963 = vmatprep.subr.bf16.mxu0 0
    %964 = vmatpush1.bf16.msra.mxu0 0
    %965 = vmatprep.subr.bf16.mxu0 0
    %966 = vmatpush1.bf16.msra.mxu0 0
    %967 = vmatprep.subr.bf16.mxu0 0
    %968 = vmatpush1.bf16.msra.mxu0 0
    %969 = vmatprep.subr.bf16.mxu0 0
    %970 = vmatpush1.bf16.msra.mxu0 0
    %971 = vmatprep.mubr.bf16.mxu0 %v140
    %972 = vmatmul.mubr.bf16.gmra.mrb[0].mxu0 %v72
    %v973 = vpop.f32.mrb[0].mxu0
    %v974 = vadd.f32 0.0, %v973
    %v975 = vpop.f32.mrb[0].mxu0
    %v976 = vpop.f32.mrb[0].mxu0
    %v977 = vadd.f32 0.0, %v976
    %v978 = vpop.f32.mrb[0].mxu0
    %979 = vmatprep.mubr.bf16.mxu0 %v143
    %980 = vmatmul.mubr.bf16.gmra.mrb[0].mxu0 %v74
    %v981 = vpop.f32.mrb[0].mxu0
    %v982 = vadd.f32 0.0, %v981
    %v983 = vpop.f32.mrb[0].mxu0
    %v984 = vpop.f32.mrb[0].mxu0
    %v985 = vadd.f32 0.0, %v984
    %v986 = vpop.f32.mrb[0].mxu0
    %987 = vdwg.mxu0
    %v988 = vmax.f32 %v855, %v974
    %v989 = vmax.f32 %v856, %v977
    %v990 = vmax.f32 %v857, %v982
    %v991 = vmax.f32 %v858, %v985
    %v992 = vld [vmem:[#allocation2 + $0x70] sm:$0xf]
    %v993 = vld [vmem:[#allocation2 + $0x74] sm:$0xf]
    %v994 = vld [vmem:[#allocation2 + $0x78] sm:$0xf]
    %v995 = vld [vmem:[#allocation2 + $0x7c] sm:$0xf]
    %v996 = vld [vmem:[#allocation2 + $0x80] sm:$0xf]
    %v997 = vld [vmem:[#allocation2 + $0x84] sm:$0xf]
    %v998 = vld [vmem:[#allocation2 + $0x88] sm:$0xf]
    %v999 = vld [vmem:[#allocation2 + $0x8c] sm:$0xf]
    %v1000 = vld [vmem:[#allocation2 + $0x90] sm:$0xf]
    %v1001 = vld [vmem:[#allocation2 + $0x94] sm:$0xf]
    %v1002 = vld [vmem:[#allocation2 + $0x98] sm:$0xf]
    %v1003 = vld [vmem:[#allocation2 + $0x9c] sm:$0xf]
    %v1004 = vld [vmem:[#allocation2 + $0xa0] sm:$0xf]
    %v1005 = vld [vmem:[#allocation2 + $0xa4] sm:$0xf]
    %v1006 = vld [vmem:[#allocation2 + $0xa8] sm:$0xf]
    %v1007 = vld [vmem:[#allocation2 + $0xac] sm:$0xf]
    %v1008 = vld [vmem:[#allocation2 + $0xb0] sm:$0xf]
    %v1009 = vld [vmem:[#allocation2 + $0xb4] sm:$0xf]
    %v1010 = vld [vmem:[#allocation2 + $0xb8] sm:$0xf]
    %v1011 = vld [vmem:[#allocation2 + $0xbc] sm:$0xf]
    %v1032 = vunpack.c.l.b16 %v992
    %v1033 = vunpack.c.l.b16 %v993
    %v1034 = vunpack.c.l.b16 %v994
    %v1035 = vunpack.c.l.b16 %v995
    %v1036 = vunpack.c.l.b16 %v996
    %v1037 = vunpack.c.l.b16 %v997
    %v1038 = vunpack.c.l.b16 %v998
    %v1039 = vunpack.c.l.b16 %v999
    %v1040 = vunpack.c.l.b16 %v1000
    %v1041 = vunpack.c.l.b16 %v1001
    %v1042 = vunpack.c.l.b16 %v1002
    %v1043 = vunpack.c.l.b16 %v1003
    %v1044 = vunpack.c.l.b16 %v1004
    %v1045 = vunpack.c.l.b16 %v1005
    %v1046 = vunpack.c.l.b16 %v1006
    %v1047 = vunpack.c.l.b16 %v1007
    %v1048 = vunpack.c.l.b16 %v1008
    %v1049 = vunpack.c.l.b16 %v1009
    %v1050 = vunpack.c.l.b16 %v1010
    %v1051 = vunpack.c.l.b16 %v1011
    %v1052 = vpack.c.b16 %v1033, %v1032
    %v1053 = vpack.c.b16 %v1035, %v1034
    %v1054 = vpack.c.b16 %v1037, %v1036
    %v1055 = vpack.c.b16 %v1039, %v1038
    %v1056 = vpack.c.b16 %v1041, %v1040
    %v1057 = vpack.c.b16 %v1043, %v1042
    %v1058 = vpack.c.b16 %v1045, %v1044
    %v1059 = vpack.c.b16 %v1047, %v1046
    %v1060 = vpack.c.b16 %v1049, %v1048
    %v1061 = vpack.c.b16 %v1051, %v1050
    %1072 = vmatprep.subr.bf16.mxu0 0
    %1073 = vmatpush1.bf16.msra.mxu0 %v1052
    %1074 = vmatprep.subr.bf16.mxu0 0
    %1075 = vmatpush1.bf16.msra.mxu0 %v1053
    %1076 = vmatprep.subr.bf16.mxu0 0
    %1077 = vmatpush1.bf16.msra.mxu0 %v1054
    %1078 = vmatprep.subr.bf16.mxu0 0
    %1079 = vmatpush1.bf16.msra.mxu0 %v1055
    %1080 = vmatprep.subr.bf16.mxu0 0
    %1081 = vmatpush1.bf16.msra.mxu0 %v1056
    %1082 = vmatprep.subr.bf16.mxu0 0
    %1083 = vmatpush1.bf16.msra.mxu0 %v1057
    %1084 = vmatprep.subr.bf16.mxu0 0
    %1085 = vmatpush1.bf16.msra.mxu0 %v1058
    %1086 = vmatprep.subr.bf16.mxu0 0
    %1087 = vmatpush1.bf16.msra.mxu0 %v1059
    %1088 = vmatprep.subr.bf16.mxu0 0
    %1089 = vmatpush1.bf16.msra.mxu0 %v1060
    %1090 = vmatprep.subr.bf16.mxu0 0
    %1091 = vmatpush1.bf16.msra.mxu0 %v1061
    %1092 = vmatprep.subr.bf16.mxu0 0
    %1093 = vmatpush1.bf16.msra.mxu0 0
    %1094 = vmatprep.subr.bf16.mxu0 0
    %1095 = vmatpush1.bf16.msra.mxu0 0
    %1096 = vmatprep.subr.bf16.mxu0 0
    %1097 = vmatpush1.bf16.msra.mxu0 0
    %1098 = vmatprep.subr.bf16.mxu0 0
    %1099 = vmatpush1.bf16.msra.mxu0 0
    %1100 = vmatprep.subr.bf16.mxu0 0
    %1101 = vmatpush1.bf16.msra.mxu0 0
    %1102 = vmatprep.subr.bf16.mxu0 0
    %1103 = vmatpush1.bf16.msra.mxu0 0
    %1104 = vmatprep.mubr.bf16.mxu0 %v140
    %1105 = vmatmul.mubr.bf16.gmra.mrb[0].mxu0 %v72
    %v1106 = vpop.f32.mrb[0].mxu0
    %v1107 = vadd.f32 0.0, %v1106
    %v1108 = vpop.f32.mrb[0].mxu0
    %v1109 = vpop.f32.mrb[0].mxu0
    %v1110 = vadd.f32 0.0, %v1109
    %v1111 = vpop.f32.mrb[0].mxu0
    %1112 = vmatprep.mubr.bf16.mxu0 %v143
    %1113 = vmatmul.mubr.bf16.gmra.mrb[0].mxu0 %v74
    %v1114 = vpop.f32.mrb[0].mxu0
    %v1115 = vadd.f32 0.0, %v1114
    %v1116 = vpop.f32.mrb[0].mxu0
    %v1117 = vpop.f32.mrb[0].mxu0
    %v1118 = vadd.f32 0.0, %v1117
    %v1119 = vpop.f32.mrb[0].mxu0
    %1120 = vdwg.mxu0
    %v1121 = vmax.f32 %v988, %v1107
    %v1122 = vmax.f32 %v989, %v1110
    %v1123 = vmax.f32 %v990, %v1115
    %v1124 = vmax.f32 %v991, %v1118
    %v1125 = vld [vmem:[#allocation2 + $0x80] sm:$0xf]
    %v1126 = vld [vmem:[#allocation2 + $0x84] sm:$0xf]
    %v1127 = vld [vmem:[#allocation2 + $0x88] sm:$0xf]
    %v1128 = vld [vmem:[#allocation2 + $0x8c] sm:$0xf]
    %v1129 = vld [vmem:[#allocation2 + $0x90] sm:$0xf]
    %v1130 = vld [vmem:[#allocation2 + $0x94] sm:$0xf]
    %v1131 = vld [vmem:[#allocation2 + $0x98] sm:$0xf]
    %v1132 = vld [vmem:[#allocation2 + $0x9c] sm:$0xf]
    %v1133 = vld [vmem:[#allocation2 + $0xa0] sm:$0xf]
    %v1134 = vld [vmem:[#allocation2 + $0xa4] sm:$0xf]
    %v1135 = vld [vmem:[#allocation2 + $0xa8] sm:$0xf]
    %v1136 = vld [vmem:[#allocation2 + $0xac] sm:$0xf]
    %v1137 = vld [vmem:[#allocation2 + $0xb0] sm:$0xf]
    %v1138 = vld [vmem:[#allocation2 + $0xb4] sm:$0xf]
    %v1139 = vld [vmem:[#allocation2 + $0xb8] sm:$0xf]
    %v1140 = vld [vmem:[#allocation2 + $0xbc] sm:$0xf]
    %v1141 = vld [vmem:[#allocation2 + $0xc0] sm:$0xf]
    %v1142 = vld [vmem:[#allocation2 + $0xc4] sm:$0xf]
    %v1143 = vld [vmem:[#allocation2 + $0xc8] sm:$0xf]
    %v1144 = vld [vmem:[#allocation2 + $0xcc] sm:$0xf]
    %v1165 = vunpack.c.l.b16 %v1125
    %v1166 = vunpack.c.l.b16 %v1126
    %v1167 = vunpack.c.l.b16 %v1127
    %v1168 = vunpack.c.l.b16 %v1128
    %v1169 = vunpack.c.l.b16 %v1129
    %v1170 = vunpack.c.l.b16 %v1130
    %v1171 = vunpack.c.l.b16 %v1131
    %v1172 = vunpack.c.l.b16 %v1132
    %v1173 = vunpack.c.l.b16 %v1133
    %v1174 = vunpack.c.l.b16 %v1134
    %v1175 = vunpack.c.l.b16 %v1135
    %v1176 = vunpack.c.l.b16 %v1136
    %v1177 = vunpack.c.l.b16 %v1137
    %v1178 = vunpack.c.l.b16 %v1138
    %v1179 = vunpack.c.l.b16 %v1139
    %v1180 = vunpack.c.l.b16 %v1140
    %v1181 = vunpack.c.l.b16 %v1141
    %v1182 = vunpack.c.l.b16 %v1142
    %v1183 = vunpack.c.l.b16 %v1143
    %v1184 = vunpack.c.l.b16 %v1144
    %v1185 = vpack.c.b16 %v1166, %v1165
    %v1186 = vpack.c.b16 %v1168, %v1167
    %v1187 = vpack.c.b16 %v1170, %v1169
    %v1188 = vpack.c.b16 %v1172, %v1171
    %v1189 = vpack.c.b16 %v1174, %v1173
    %v1190 = vpack.c.b16 %v1176, %v1175
    %v1191 = vpack.c.b16 %v1178, %v1177
    %v1192 = vpack.c.b16 %v1180, %v1179
    %v1193 = vpack.c.b16 %v1182, %v1181
    %v1194 = vpack.c.b16 %v1184, %v1183
    %1205 = vmatprep.subr.bf16.mxu0 0
    %1206 = vmatpush1.bf16.msra.mxu0 %v1185
    %1207 = vmatprep.subr.bf16.mxu0 0
    %1208 = vmatpush1.bf16.msra.mxu0 %v1186
    %1209 = vmatprep.subr.bf16.mxu0 0
    %1210 = vmatpush1.bf16.msra.mxu0 %v1187
    %1211 = vmatprep.subr.bf16.mxu0 0
    %1212 = vmatpush1.bf16.msra.mxu0 %v1188
    %1213 = vmatprep.subr.bf16.mxu0 0
    %1214 = vmatpush1.bf16.msra.mxu0 %v1189
    %1215 = vmatprep.subr.bf16.mxu0 0
    %1216 = vmatpush1.bf16.msra.mxu0 %v1190
    %1217 = vmatprep.subr.bf16.mxu0 0
    %1218 = vmatpush1.bf16.msra.mxu0 %v1191
    %1219 = vmatprep.subr.bf16.mxu0 0
    %1220 = vmatpush1.bf16.msra.mxu0 %v1192
    %1221 = vmatprep.subr.bf16.mxu0 0
    %1222 = vmatpush1.bf16.msra.mxu0 %v1193
    %1223 = vmatprep.subr.bf16.mxu0 0
    %1224 = vmatpush1.bf16.msra.mxu0 %v1194
    %1225 = vmatprep.subr.bf16.mxu0 0
    %1226 = vmatpush1.bf16.msra.mxu0 0
    %1227 = vmatprep.subr.bf16.mxu0 0
    %1228 = vmatpush1.bf16.msra.mxu0 0
    %1229 = vmatprep.subr.bf16.mxu0 0
    %1230 = vmatpush1.bf16.msra.mxu0 0
    %1231 = vmatprep.subr.bf16.mxu0 0
    %1232 = vmatpush1.bf16.msra.mxu0 0
    %1233 = vmatprep.subr.bf16.mxu0 0
    %1234 = vmatpush1.bf16.msra.mxu0 0
    %1235 = vmatprep.subr.bf16.mxu0 0
    %1236 = vmatpush1.bf16.msra.mxu0 0
    %1237 = vmatprep.mubr.bf16.mxu0 %v140
    %1238 = vmatmul.mubr.bf16.gmra.mrb[0].mxu0 %v72
    %v1239 = vpop.f32.mrb[0].mxu0
    %v1240 = vadd.f32 0.0, %v1239
    %v1241 = vpop.f32.mrb[0].mxu0
    %v1242 = vpop.f32.mrb[0].mxu0
    %v1243 = vadd.f32 0.0, %v1242
    %v1244 = vpop.f32.mrb[0].mxu0
    %1245 = vmatprep.mubr.bf16.mxu0 %v143
    %1246 = vmatmul.mubr.bf16.gmra.mrb[0].mxu0 %v74
    %v1247 = vpop.f32.mrb[0].mxu0
    %v1248 = vadd.f32 0.0, %v1247
    %v1249 = vpop.f32.mrb[0].mxu0
    %v1250 = vpop.f32.mrb[0].mxu0
    %v1251 = vadd.f32 0.0, %v1250
    %v1252 = vpop.f32.mrb[0].mxu0
    %1253 = vdwg.mxu0
    %v1254 = vmax.f32 %v1121, %v1240
    %v1255 = vmax.f32 %v1122, %v1243
    %v1256 = vmax.f32 %v1123, %v1248
    %v1257 = vmax.f32 %v1124, %v1251
    %v1258 = vld [vmem:[#allocation2 + $0x90] sm:$0xf]
    %v1259 = vld [vmem:[#allocation2 + $0x94] sm:$0xf]
    %v1260 = vld [vmem:[#allocation2 + $0x98] sm:$0xf]
    %v1261 = vld [vmem:[#allocation2 + $0x9c] sm:$0xf]
    %v1262 = vld [vmem:[#allocation2 + $0xa0] sm:$0xf]
    %v1263 = vld [vmem:[#allocation2 + $0xa4] sm:$0xf]
    %v1264 = vld [vmem:[#allocation2 + $0xa8] sm:$0xf]
    %v1265 = vld [vmem:[#allocation2 + $0xac] sm:$0xf]
    %v1266 = vld [vmem:[#allocation2 + $0xb0] sm:$0xf]
    %v1267 = vld [vmem:[#allocation2 + $0xb4] sm:$0xf]
    %v1268 = vld [vmem:[#allocation2 + $0xb8] sm:$0xf]
    %v1269 = vld [vmem:[#allocation2 + $0xbc] sm:$0xf]
    %v1270 = vld [vmem:[#allocation2 + $0xc0] sm:$0xf]
    %v1271 = vld [vmem:[#allocation2 + $0xc4] sm:$0xf]
    %v1272 = vld [vmem:[#allocation2 + $0xc8] sm:$0xf]
    %v1273 = vld [vmem:[#allocation2 + $0xcc] sm:$0xf]
    %v1274 = vld [vmem:[#allocation2 + $0xd0] sm:$0xf]
    %v1275 = vld [vmem:[#allocation2 + $0xd4] sm:$0xf]
    %v1276 = vld [vmem:[#allocation2 + $0xd8] sm:$0xf]
    %v1277 = vld [vmem:[#allocation2 + $0xdc] sm:$0xf]
    %v1298 = vunpack.c.l.b16 %v1258
    %v1299 = vunpack.c.l.b16 %v1259
    %v1300 = vunpack.c.l.b16 %v1260
    %v1301 = vunpack.c.l.b16 %v1261
    %v1302 = vunpack.c.l.b16 %v1262
    %v1303 = vunpack.c.l.b16 %v1263
    %v1304 = vunpack.c.l.b16 %v1264
    %v1305 = vunpack.c.l.b16 %v1265
    %v1306 = vunpack.c.l.b16 %v1266
    %v1307 = vunpack.c.l.b16 %v1267
    %v1308 = vunpack.c.l.b16 %v1268
    %v1309 = vunpack.c.l.b16 %v1269
    %v1310 = vunpack.c.l.b16 %v1270
    %v1311 = vunpack.c.l.b16 %v1271
    %v1312 = vunpack.c.l.b16 %v1272
    %v1313 = vunpack.c.l.b16 %v1273
    %v1314 = vunpack.c.l.b16 %v1274
    %v1315 = vunpack.c.l.b16 %v1275
    %v1316 = vunpack.c.l.b16 %v1276
    %v1317 = vunpack.c.l.b16 %v1277
    %v1318 = vpack.c.b16 %v1299, %v1298
    %v1319 = vpack.c.b16 %v1301, %v1300
    %v1320 = vpack.c.b16 %v1303, %v1302
    %v1321 = vpack.c.b16 %v1305, %v1304
    %v1322 = vpack.c.b16 %v1307, %v1306
    %v1323 = vpack.c.b16 %v1309, %v1308
    %v1324 = vpack.c.b16 %v1311, %v1310
    %v1325 = vpack.c.b16 %v1313, %v1312
    %v1326 = vpack.c.b16 %v1315, %v1314
    %v1327 = vpack.c.b16 %v1317, %v1316
    %1338 = vmatprep.subr.bf16.mxu0 0
    %1339 = vmatpush1.bf16.msra.mxu0 %v1318
    %1340 = vmatprep.subr.bf16.mxu0 0
    %1341 = vmatpush1.bf16.msra.mxu0 %v1319
    %1342 = vmatprep.subr.bf16.mxu0 0
    %1343 = vmatpush1.bf16.msra.mxu0 %v1320
    %1344 = vmatprep.subr.bf16.mxu0 0
    %1345 = vmatpush1.bf16.msra.mxu0 %v1321
    %1346 = vmatprep.subr.bf16.mxu0 0
    %1347 = vmatpush1.bf16.msra.mxu0 %v1322
    %1348 = vmatprep.subr.bf16.mxu0 0
    %1349 = vmatpush1.bf16.msra.mxu0 %v1323
    %1350 = vmatprep.subr.bf16.mxu0 0
    %1351 = vmatpush1.bf16.msra.mxu0 %v1324
    %1352 = vmatprep.subr.bf16.mxu0 0
    %1353 = vmatpush1.bf16.msra.mxu0 %v1325
    %1354 = vmatprep.subr.bf16.mxu0 0
    %1355 = vmatpush1.bf16.msra.mxu0 %v1326
    %1356 = vmatprep.subr.bf16.mxu0 0
    %1357 = vmatpush1.bf16.msra.mxu0 %v1327
    %1358 = vmatprep.subr.bf16.mxu0 0
    %1359 = vmatpush1.bf16.msra.mxu0 0
    %1360 = vmatprep.subr.bf16.mxu0 0
    %1361 = vmatpush1.bf16.msra.mxu0 0
    %1362 = vmatprep.subr.bf16.mxu0 0
    %1363 = vmatpush1.bf16.msra.mxu0 0
    %1364 = vmatprep.subr.bf16.mxu0 0
    %1365 = vmatpush1.bf16.msra.mxu0 0
    %1366 = vmatprep.subr.bf16.mxu0 0
    %1367 = vmatpush1.bf16.msra.mxu0 0
    %1368 = vmatprep.subr.bf16.mxu0 0
    %1369 = vmatpush1.bf16.msra.mxu0 0
    %1370 = vmatprep.mubr.bf16.mxu0 %v140
    %1371 = vmatmul.mubr.bf16.gmra.mrb[0].mxu0 %v72
    %v1372 = vpop.f32.mrb[0].mxu0
    %v1373 = vadd.f32 0.0, %v1372
    %v1374 = vpop.f32.mrb[0].mxu0
    %v1375 = vpop.f32.mrb[0].mxu0
    %v1376 = vadd.f32 0.0, %v1375
    %v1377 = vpop.f32.mrb[0].mxu0
    %1378 = vmatprep.mubr.bf16.mxu0 %v143
    %1379 = vmatmul.mubr.bf16.gmra.mrb[0].mxu0 %v74
    %v1380 = vpop.f32.mrb[0].mxu0
    %v1381 = vadd.f32 0.0, %v1380
    %v1382 = vpop.f32.mrb[0].mxu0
    %v1383 = vpop.f32.mrb[0].mxu0
    %v1384 = vadd.f32 0.0, %v1383
    %v1385 = vpop.f32.mrb[0].mxu0
    %1386 = vdwg.mxu0
    %v1387 = vmax.f32 %v1254, %v1373
    %v1388 = vmax.f32 %v1255, %v1376
    %v1389 = vmax.f32 %v1256, %v1381
    %v1390 = vmax.f32 %v1257, %v1384
    %v1391 = vld [vmem:[#allocation2 + $0xa0] sm:$0xf]
    %v1392 = vld [vmem:[#allocation2 + $0xa4] sm:$0xf]
    %v1393 = vld [vmem:[#allocation2 + $0xa8] sm:$0xf]
    %v1394 = vld [vmem:[#allocation2 + $0xac] sm:$0xf]
    %v1395 = vld [vmem:[#allocation2 + $0xb0] sm:$0xf]
    %v1396 = vld [vmem:[#allocation2 + $0xb4] sm:$0xf]
    %v1397 = vld [vmem:[#allocation2 + $0xb8] sm:$0xf]
    %v1398 = vld [vmem:[#allocation2 + $0xbc] sm:$0xf]
    %v1399 = vld [vmem:[#allocation2 + $0xc0] sm:$0xf]
    %v1400 = vld [vmem:[#allocation2 + $0xc4] sm:$0xf]
    %v1401 = vld [vmem:[#allocation2 + $0xc8] sm:$0xf]
    %v1402 = vld [vmem:[#allocation2 + $0xcc] sm:$0xf]
    %v1403 = vld [vmem:[#allocation2 + $0xd0] sm:$0xf]
    %v1404 = vld [vmem:[#allocation2 + $0xd4] sm:$0xf]
    %v1405 = vld [vmem:[#allocation2 + $0xd8] sm:$0xf]
    %v1406 = vld [vmem:[#allocation2 + $0xdc] sm:$0xf]
    %v1407 = vld [vmem:[#allocation2 + $0xe0] sm:$0xf]
    %v1408 = vld [vmem:[#allocation2 + $0xe4] sm:$0xf]
    %v1409 = vld [vmem:[#allocation2 + $0xe8] sm:$0xf]
    %v1410 = vld [vmem:[#allocation2 + $0xec] sm:$0xf]
    %v1431 = vunpack.c.l.b16 %v1391
    %v1432 = vunpack.c.l.b16 %v1392
    %v1433 = vunpack.c.l.b16 %v1393
    %v1434 = vunpack.c.l.b16 %v1394
    %v1435 = vunpack.c.l.b16 %v1395
    %v1436 = vunpack.c.l.b16 %v1396
    %v1437 = vunpack.c.l.b16 %v1397
    %v1438 = vunpack.c.l.b16 %v1398
    %v1439 = vunpack.c.l.b16 %v1399
    %v1440 = vunpack.c.l.b16 %v1400
    %v1441 = vunpack.c.l.b16 %v1401
    %v1442 = vunpack.c.l.b16 %v1402
    %v1443 = vunpack.c.l.b16 %v1403
    %v1444 = vunpack.c.l.b16 %v1404
    %v1445 = vunpack.c.l.b16 %v1405
    %v1446 = vunpack.c.l.b16 %v1406
    %v1447 = vunpack.c.l.b16 %v1407
    %v1448 = vunpack.c.l.b16 %v1408
    %v1449 = vunpack.c.l.b16 %v1409
    %v1450 = vunpack.c.l.b16 %v1410
    %v1451 = vpack.c.b16 %v1432, %v1431
    %v1452 = vpack.c.b16 %v1434, %v1433
    %v1453 = vpack.c.b16 %v1436, %v1435
    %v1454 = vpack.c.b16 %v1438, %v1437
    %v1455 = vpack.c.b16 %v1440, %v1439
    %v1456 = vpack.c.b16 %v1442, %v1441
    %v1457 = vpack.c.b16 %v1444, %v1443
    %v1458 = vpack.c.b16 %v1446, %v1445
    %v1459 = vpack.c.b16 %v1448, %v1447
    %v1460 = vpack.c.b16 %v1450, %v1449
    %1471 = vmatprep.subr.bf16.mxu0 0
    %1472 = vmatpush1.bf16.msra.mxu0 %v1451
    %1473 = vmatprep.subr.bf16.mxu0 0
    %1474 = vmatpush1.bf16.msra.mxu0 %v1452
    %1475 = vmatprep.subr.bf16.mxu0 0
    %1476 = vmatpush1.bf16.msra.mxu0 %v1453
    %1477 = vmatprep.subr.bf16.mxu0 0
    %1478 = vmatpush1.bf16.msra.mxu0 %v1454
    %1479 = vmatprep.subr.bf16.mxu0 0
    %1480 = vmatpush1.bf16.msra.mxu0 %v1455
    %1481 = vmatprep.subr.bf16.mxu0 0
    %1482 = vmatpush1.bf16.msra.mxu0 %v1456
    %1483 = vmatprep.subr.bf16.mxu0 0
    %1484 = vmatpush1.bf16.msra.mxu0 %v1457
    %1485 = vmatprep.subr.bf16.mxu0 0
    %1486 = vmatpush1.bf16.msra.mxu0 %v1458
    %1487 = vmatprep.subr.bf16.mxu0 0
    %1488 = vmatpush1.bf16.msra.mxu0 %v1459
    %1489 = vmatprep.subr.bf16.mxu0 0
    %1490 = vmatpush1.bf16.msra.mxu0 %v1460
    %1491 = vmatprep.subr.bf16.mxu0 0
    %1492 = vmatpush1.bf16.msra.mxu0 0
    %1493 = vmatprep.subr.bf16.mxu0 0
    %1494 = vmatpush1.bf16.msra.mxu0 0
    %1495 = vmatprep.subr.bf16.mxu0 0
    %1496 = vmatpush1.bf16.msra.mxu0 0
    %1497 = vmatprep.subr.bf16.mxu0 0
    %1498 = vmatpush1.bf16.msra.mxu0 0
    %1499 = vmatprep.subr.bf16.mxu0 0
    %1500 = vmatpush1.bf16.msra.mxu0 0
    %1501 = vmatprep.subr.bf16.mxu0 0
    %1502 = vmatpush1.bf16.msra.mxu0 0
    %1503 = vmatprep.mubr.bf16.mxu0 %v140
    %1504 = vmatmul.mubr.bf16.gmra.mrb[0].mxu0 %v72
    %v1505 = vpop.f32.mrb[0].mxu0
    %v1506 = vadd.f32 0.0, %v1505
    %v1507 = vpop.f32.mrb[0].mxu0
    %v1508 = vpop.f32.mrb[0].mxu0
    %v1509 = vadd.f32 0.0, %v1508
    %v1510 = vpop.f32.mrb[0].mxu0
    %1511 = vmatprep.mubr.bf16.mxu0 %v143
    %1512 = vmatmul.mubr.bf16.gmra.mrb[0].mxu0 %v74
    %v1513 = vpop.f32.mrb[0].mxu0
    %v1514 = vadd.f32 0.0, %v1513
    %v1515 = vpop.f32.mrb[0].mxu0
    %v1516 = vpop.f32.mrb[0].mxu0
    %v1517 = vadd.f32 0.0, %v1516
    %v1518 = vpop.f32.mrb[0].mxu0
    %1519 = vdwg.mxu0
    %v1520 = vmax.f32 %v1387, %v1506
    %v1521 = vmax.f32 %v1388, %v1509
    %v1522 = vmax.f32 %v1389, %v1514
    %v1523 = vmax.f32 %v1390, %v1517
    %v1524 = vld [vmem:[#allocation2 + $0xb0] sm:$0xf]
    %v1525 = vld [vmem:[#allocation2 + $0xb4] sm:$0xf]
    %v1526 = vld [vmem:[#allocation2 + $0xb8] sm:$0xf]
    %v1527 = vld [vmem:[#allocation2 + $0xbc] sm:$0xf]
    %v1528 = vld [vmem:[#allocation2 + $0xc0] sm:$0xf]
    %v1529 = vld [vmem:[#allocation2 + $0xc4] sm:$0xf]
    %v1530 = vld [vmem:[#allocation2 + $0xc8] sm:$0xf]
    %v1531 = vld [vmem:[#allocation2 + $0xcc] sm:$0xf]
    %v1532 = vld [vmem:[#allocation2 + $0xd0] sm:$0xf]
    %v1533 = vld [vmem:[#allocation2 + $0xd4] sm:$0xf]
    %v1534 = vld [vmem:[#allocation2 + $0xd8] sm:$0xf]
    %v1535 = vld [vmem:[#allocation2 + $0xdc] sm:$0xf]
    %v1536 = vld [vmem:[#allocation2 + $0xe0] sm:$0xf]
    %v1537 = vld [vmem:[#allocation2 + $0xe4] sm:$0xf]
    %v1538 = vld [vmem:[#allocation2 + $0xe8] sm:$0xf]
    %v1539 = vld [vmem:[#allocation2 + $0xec] sm:$0xf]
    %v1540 = vld [vmem:[#allocation2 + $0xf0] sm:$0xf]
    %v1541 = vld [vmem:[#allocation2 + $0xf4] sm:$0xf]
    %v1542 = vld [vmem:[#allocation2 + $0xf8] sm:$0xf]
    %v1543 = vld [vmem:[#allocation2 + $0xfc] sm:$0xf]
    %v1564 = vunpack.c.l.b16 %v1524
    %v1565 = vunpack.c.l.b16 %v1525
    %v1566 = vunpack.c.l.b16 %v1526
    %v1567 = vunpack.c.l.b16 %v1527
    %v1568 = vunpack.c.l.b16 %v1528
    %v1569 = vunpack.c.l.b16 %v1529
    %v1570 = vunpack.c.l.b16 %v1530
    %v1571 = vunpack.c.l.b16 %v1531
    %v1572 = vunpack.c.l.b16 %v1532
    %v1573 = vunpack.c.l.b16 %v1533
    %v1574 = vunpack.c.l.b16 %v1534
    %v1575 = vunpack.c.l.b16 %v1535
    %v1576 = vunpack.c.l.b16 %v1536
    %v1577 = vunpack.c.l.b16 %v1537
    %v1578 = vunpack.c.l.b16 %v1538
    %v1579 = vunpack.c.l.b16 %v1539
    %v1580 = vunpack.c.l.b16 %v1540
    %v1581 = vunpack.c.l.b16 %v1541
    %v1582 = vunpack.c.l.b16 %v1542
    %v1583 = vunpack.c.l.b16 %v1543
    %v1584 = vpack.c.b16 %v1565, %v1564
    %v1585 = vpack.c.b16 %v1567, %v1566
    %v1586 = vpack.c.b16 %v1569, %v1568
    %v1587 = vpack.c.b16 %v1571, %v1570
    %v1588 = vpack.c.b16 %v1573, %v1572
    %v1589 = vpack.c.b16 %v1575, %v1574
    %v1590 = vpack.c.b16 %v1577, %v1576
    %v1591 = vpack.c.b16 %v1579, %v1578
    %v1592 = vpack.c.b16 %v1581, %v1580
    %v1593 = vpack.c.b16 %v1583, %v1582
    %1604 = vmatprep.subr.bf16.mxu0 0
    %1605 = vmatpush1.bf16.msra.mxu0 %v1584
    %1606 = vmatprep.subr.bf16.mxu0 0
    %1607 = vmatpush1.bf16.msra.mxu0 %v1585
    %1608 = vmatprep.subr.bf16.mxu0 0
    %1609 = vmatpush1.bf16.msra.mxu0 %v1586
    %1610 = vmatprep.subr.bf16.mxu0 0
    %1611 = vmatpush1.bf16.msra.mxu0 %v1587
    %1612 = vmatprep.subr.bf16.mxu0 0
    %1613 = vmatpush1.bf16.msra.mxu0 %v1588
    %1614 = vmatprep.subr.bf16.mxu0 0
    %1615 = vmatpush1.bf16.msra.mxu0 %v1589
    %1616 = vmatprep.subr.bf16.mxu0 0
    %1617 = vmatpush1.bf16.msra.mxu0 %v1590
    %1618 = vmatprep.subr.bf16.mxu0 0
    %1619 = vmatpush1.bf16.msra.mxu0 %v1591
    %1620 = vmatprep.subr.bf16.mxu0 0
    %1621 = vmatpush1.bf16.msra.mxu0 %v1592
    %1622 = vmatprep.subr.bf16.mxu0 0
    %1623 = vmatpush1.bf16.msra.mxu0 %v1593
    %1624 = vmatprep.subr.bf16.mxu0 0
    %1625 = vmatpush1.bf16.msra.mxu0 0
    %1626 = vmatprep.subr.bf16.mxu0 0
    %1627 = vmatpush1.bf16.msra.mxu0 0
    %1628 = vmatprep.subr.bf16.mxu0 0
    %1629 = vmatpush1.bf16.msra.mxu0 0
    %1630 = vmatprep.subr.bf16.mxu0 0
    %1631 = vmatpush1.bf16.msra.mxu0 0
    %1632 = vmatprep.subr.bf16.mxu0 0
    %1633 = vmatpush1.bf16.msra.mxu0 0
    %1634 = vmatprep.subr.bf16.mxu0 0
    %1635 = vmatpush1.bf16.msra.mxu0 0
    %1636 = vmatprep.mubr.bf16.mxu0 %v140
    %1637 = vmatmul.mubr.bf16.gmra.mrb[0].mxu0 %v72
    %v1638 = vpop.f32.mrb[0].mxu0
    %v1639 = vadd.f32 0.0, %v1638
    %v1640 = vpop.f32.mrb[0].mxu0
    %v1641 = vpop.f32.mrb[0].mxu0
    %v1642 = vadd.f32 0.0, %v1641
    %v1643 = vpop.f32.mrb[0].mxu0
    %1644 = vmatprep.mubr.bf16.mxu0 %v143
    %1645 = vmatmul.mubr.bf16.gmra.mrb[0].mxu0 %v74
    %v1646 = vpop.f32.mrb[0].mxu0
    %v1647 = vadd.f32 0.0, %v1646
    %v1648 = vpop.f32.mrb[0].mxu0
    %v1649 = vpop.f32.mrb[0].mxu0
    %v1650 = vadd.f32 0.0, %v1649
    %v1651 = vpop.f32.mrb[0].mxu0
    %1652 = vdwg.mxu0
    %v1653 = vmax.f32 %v1520, %v1639
    %v1654 = vmax.f32 %v1521, %v1642
    %v1655 = vmax.f32 %v1522, %v1647
    %v1656 = vmax.f32 %v1523, %v1650
    %v1657 = vld [vmem:[#allocation2 + $0xc0] sm:$0xf]
    %v1658 = vld [vmem:[#allocation2 + $0xc4] sm:$0xf]
    %v1659 = vld [vmem:[#allocation2 + $0xc8] sm:$0xf]
    %v1660 = vld [vmem:[#allocation2 + $0xcc] sm:$0xf]
    %v1661 = vld [vmem:[#allocation2 + $0xd0] sm:$0xf]
    %v1662 = vld [vmem:[#allocation2 + $0xd4] sm:$0xf]
    %v1663 = vld [vmem:[#allocation2 + $0xd8] sm:$0xf]
    %v1664 = vld [vmem:[#allocation2 + $0xdc] sm:$0xf]
    %v1665 = vld [vmem:[#allocation2 + $0xe0] sm:$0xf]
    %v1666 = vld [vmem:[#allocation2 + $0xe4] sm:$0xf]
    %v1667 = vld [vmem:[#allocation2 + $0xe8] sm:$0xf]
    %v1668 = vld [vmem:[#allocation2 + $0xec] sm:$0xf]
    %v1669 = vld [vmem:[#allocation2 + $0xf0] sm:$0xf]
    %v1670 = vld [vmem:[#allocation2 + $0xf4] sm:$0xf]
    %v1671 = vld [vmem:[#allocation2 + $0xf8] sm:$0xf]
    %v1672 = vld [vmem:[#allocation2 + $0xfc] sm:$0xf]
    %v1673 = vld [vmem:[#allocation2 + $0x100] sm:$0xf]
    %v1674 = vld [vmem:[#allocation2 + $0x104] sm:$0xf]
    %v1675 = vld [vmem:[#allocation2 + $0x108] sm:$0xf]
    %v1676 = vld [vmem:[#allocation2 + $0x10c] sm:$0xf]
    %v1697 = vunpack.c.l.b16 %v1657
    %v1698 = vunpack.c.l.b16 %v1658
    %v1699 = vunpack.c.l.b16 %v1659
    %v1700 = vunpack.c.l.b16 %v1660
    %v1701 = vunpack.c.l.b16 %v1661
    %v1702 = vunpack.c.l.b16 %v1662
    %v1703 = vunpack.c.l.b16 %v1663
    %v1704 = vunpack.c.l.b16 %v1664
    %v1705 = vunpack.c.l.b16 %v1665
    %v1706 = vunpack.c.l.b16 %v1666
    %v1707 = vunpack.c.l.b16 %v1667
    %v1708 = vunpack.c.l.b16 %v1668
    %v1709 = vunpack.c.l.b16 %v1669
    %v1710 = vunpack.c.l.b16 %v1670
    %v1711 = vunpack.c.l.b16 %v1671
    %v1712 = vunpack.c.l.b16 %v1672
    %v1713 = vunpack.c.l.b16 %v1673
    %v1714 = vunpack.c.l.b16 %v1674
    %v1715 = vunpack.c.l.b16 %v1675
    %v1716 = vunpack.c.l.b16 %v1676
    %v1717 = vpack.c.b16 %v1698, %v1697
    %v1718 = vpack.c.b16 %v1700, %v1699
    %v1719 = vpack.c.b16 %v1702, %v1701
    %v1720 = vpack.c.b16 %v1704, %v1703
    %v1721 = vpack.c.b16 %v1706, %v1705
    %v1722 = vpack.c.b16 %v1708, %v1707
    %v1723 = vpack.c.b16 %v1710, %v1709
    %v1724 = vpack.c.b16 %v1712, %v1711
    %v1725 = vpack.c.b16 %v1714, %v1713
    %v1726 = vpack.c.b16 %v1716, %v1715
    %1737 = vmatprep.subr.bf16.mxu0 0
    %1738 = vmatpush1.bf16.msra.mxu0 %v1717
    %1739 = vmatprep.subr.bf16.mxu0 0
    %1740 = vmatpush1.bf16.msra.mxu0 %v1718
    %1741 = vmatprep.subr.bf16.mxu0 0
    %1742 = vmatpush1.bf16.msra.mxu0 %v1719
    %1743 = vmatprep.subr.bf16.mxu0 0
    %1744 = vmatpush1.bf16.msra.mxu0 %v1720
    %1745 = vmatprep.subr.bf16.mxu0 0
    %1746 = vmatpush1.bf16.msra.mxu0 %v1721
    %1747 = vmatprep.subr.bf16.mxu0 0
    %1748 = vmatpush1.bf16.msra.mxu0 %v1722
    %1749 = vmatprep.subr.bf16.mxu0 0
    %1750 = vmatpush1.bf16.msra.mxu0 %v1723
    %1751 = vmatprep.subr.bf16.mxu0 0
    %1752 = vmatpush1.bf16.msra.mxu0 %v1724
    %1753 = vmatprep.subr.bf16.mxu0 0
    %1754 = vmatpush1.bf16.msra.mxu0 %v1725
    %1755 = vmatprep.subr.bf16.mxu0 0
    %1756 = vmatpush1.bf16.msra.mxu0 %v1726
    %1757 = vmatprep.subr.bf16.mxu0 0
    %1758 = vmatpush1.bf16.msra.mxu0 0
    %1759 = vmatprep.subr.bf16.mxu0 0
    %1760 = vmatpush1.bf16.msra.mxu0 0
    %1761 = vmatprep.subr.bf16.mxu0 0
    %1762 = vmatpush1.bf16.msra.mxu0 0
    %1763 = vmatprep.subr.bf16.mxu0 0
    %1764 = vmatpush1.bf16.msra.mxu0 0
    %1765 = vmatprep.subr.bf16.mxu0 0
    %1766 = vmatpush1.bf16.msra.mxu0 0
    %1767 = vmatprep.subr.bf16.mxu0 0
    %1768 = vmatpush1.bf16.msra.mxu0 0
    %1769 = vmatprep.mubr.bf16.mxu0 %v140
    %1770 = vmatmul.mubr.bf16.gmra.mrb[0].mxu0 %v72
    %v1771 = vpop.f32.mrb[0].mxu0
    %v1772 = vadd.f32 0.0, %v1771
    %v1773 = vpop.f32.mrb[0].mxu0
    %v1774 = vpop.f32.mrb[0].mxu0
    %v1775 = vadd.f32 0.0, %v1774
    %v1776 = vpop.f32.mrb[0].mxu0
    %1777 = vmatprep.mubr.bf16.mxu0 %v143
    %1778 = vmatmul.mubr.bf16.gmra.mrb[0].mxu0 %v74
    %v1779 = vpop.f32.mrb[0].mxu0
    %v1780 = vadd.f32 0.0, %v1779
    %v1781 = vpop.f32.mrb[0].mxu0
    %v1782 = vpop.f32.mrb[0].mxu0
    %v1783 = vadd.f32 0.0, %v1782
    %v1784 = vpop.f32.mrb[0].mxu0
    %1785 = vdwg.mxu0
    %v1786 = vmax.f32 %v1653, %v1772
    %v1787 = vmax.f32 %v1654, %v1775
    %v1788 = vmax.f32 %v1655, %v1780
    %v1789 = vmax.f32 %v1656, %v1783
    %v1790 = vld [vmem:[#allocation2 + $0xd0] sm:$0xf]
    %v1791 = vld [vmem:[#allocation2 + $0xd4] sm:$0xf]
    %v1792 = vld [vmem:[#allocation2 + $0xd8] sm:$0xf]
    %v1793 = vld [vmem:[#allocation2 + $0xdc] sm:$0xf]
    %v1794 = vld [vmem:[#allocation2 + $0xe0] sm:$0xf]
    %v1795 = vld [vmem:[#allocation2 + $0xe4] sm:$0xf]
    %v1796 = vld [vmem:[#allocation2 + $0xe8] sm:$0xf]
    %v1797 = vld [vmem:[#allocation2 + $0xec] sm:$0xf]
    %v1798 = vld [vmem:[#allocation2 + $0xf0] sm:$0xf]
    %v1799 = vld [vmem:[#allocation2 + $0xf4] sm:$0xf]
    %v1800 = vld [vmem:[#allocation2 + $0xf8] sm:$0xf]
    %v1801 = vld [vmem:[#allocation2 + $0xfc] sm:$0xf]
    %v1802 = vld [vmem:[#allocation2 + $0x100] sm:$0xf]
    %v1803 = vld [vmem:[#allocation2 + $0x104] sm:$0xf]
    %v1804 = vld [vmem:[#allocation2 + $0x108] sm:$0xf]
    %v1805 = vld [vmem:[#allocation2 + $0x10c] sm:$0xf]
    %v1806 = vld [vmem:[#allocation2 + $0x110] sm:$0xf]
    %v1807 = vld [vmem:[#allocation2 + $0x114] sm:$0xf]
    %v1808 = vld [vmem:[#allocation2 + $0x118] sm:$0xf]
    %v1809 = vld [vmem:[#allocation2 + $0x11c] sm:$0xf]
    %v1830 = vunpack.c.l.b16 %v1790
    %v1831 = vunpack.c.l.b16 %v1791
    %v1832 = vunpack.c.l.b16 %v1792
    %v1833 = vunpack.c.l.b16 %v1793
    %v1834 = vunpack.c.l.b16 %v1794
    %v1835 = vunpack.c.l.b16 %v1795
    %v1836 = vunpack.c.l.b16 %v1796
    %v1837 = vunpack.c.l.b16 %v1797
    %v1838 = vunpack.c.l.b16 %v1798
    %v1839 = vunpack.c.l.b16 %v1799
    %v1840 = vunpack.c.l.b16 %v1800
    %v1841 = vunpack.c.l.b16 %v1801
    %v1842 = vunpack.c.l.b16 %v1802
    %v1843 = vunpack.c.l.b16 %v1803
    %v1844 = vunpack.c.l.b16 %v1804
    %v1845 = vunpack.c.l.b16 %v1805
    %v1846 = vunpack.c.l.b16 %v1806
    %v1847 = vunpack.c.l.b16 %v1807
    %v1848 = vunpack.c.l.b16 %v1808
    %v1849 = vunpack.c.l.b16 %v1809
    %v1850 = vpack.c.b16 %v1831, %v1830
    %v1851 = vpack.c.b16 %v1833, %v1832
    %v1852 = vpack.c.b16 %v1835, %v1834
    %v1853 = vpack.c.b16 %v1837, %v1836
    %v1854 = vpack.c.b16 %v1839, %v1838
    %v1855 = vpack.c.b16 %v1841, %v1840
    %v1856 = vpack.c.b16 %v1843, %v1842
    %v1857 = vpack.c.b16 %v1845, %v1844
    %v1858 = vpack.c.b16 %v1847, %v1846
    %v1859 = vpack.c.b16 %v1849, %v1848
    %1870 = vmatprep.subr.bf16.mxu0 0
    %1871 = vmatpush1.bf16.msra.mxu0 %v1850
    %1872 = vmatprep.subr.bf16.mxu0 0
    %1873 = vmatpush1.bf16.msra.mxu0 %v1851
    %1874 = vmatprep.subr.bf16.mxu0 0
    %1875 = vmatpush1.bf16.msra.mxu0 %v1852
    %1876 = vmatprep.subr.bf16.mxu0 0
    %1877 = vmatpush1.bf16.msra.mxu0 %v1853
    %1878 = vmatprep.subr.bf16.mxu0 0
    %1879 = vmatpush1.bf16.msra.mxu0 %v1854
    %1880 = vmatprep.subr.bf16.mxu0 0
    %1881 = vmatpush1.bf16.msra.mxu0 %v1855
    %1882 = vmatprep.subr.bf16.mxu0 0
    %1883 = vmatpush1.bf16.msra.mxu0 %v1856
    %1884 = vmatprep.subr.bf16.mxu0 0
    %1885 = vmatpush1.bf16.msra.mxu0 %v1857
    %1886 = vmatprep.subr.bf16.mxu0 0
    %1887 = vmatpush1.bf16.msra.mxu0 %v1858
    %1888 = vmatprep.subr.bf16.mxu0 0
    %1889 = vmatpush1.bf16.msra.mxu0 %v1859
    %1890 = vmatprep.subr.bf16.mxu0 0
    %1891 = vmatpush1.bf16.msra.mxu0 0
    %1892 = vmatprep.subr.bf16.mxu0 0
    %1893 = vmatpush1.bf16.msra.mxu0 0
    %1894 = vmatprep.subr.bf16.mxu0 0
    %1895 = vmatpush1.bf16.msra.mxu0 0
    %1896 = vmatprep.subr.bf16.mxu0 0
    %1897 = vmatpush1.bf16.msra.mxu0 0
    %1898 = vmatprep.subr.bf16.mxu0 0
    %1899 = vmatpush1.bf16.msra.mxu0 0
    %1900 = vmatprep.subr.bf16.mxu0 0
    %1901 = vmatpush1.bf16.msra.mxu0 0
    %1902 = vmatprep.mubr.bf16.mxu0 %v140
    %1903 = vmatmul.mubr.bf16.gmra.mrb[0].mxu0 %v72
    %v1904 = vpop.f32.mrb[0].mxu0
    %v1905 = vadd.f32 0.0, %v1904
    %v1906 = vpop.f32.mrb[0].mxu0
    %v1907 = vpop.f32.mrb[0].mxu0
    %v1908 = vadd.f32 0.0, %v1907
    %v1909 = vpop.f32.mrb[0].mxu0
    %1910 = vmatprep.mubr.bf16.mxu0 %v143
    %1911 = vmatmul.mubr.bf16.gmra.mrb[0].mxu0 %v74
    %v1912 = vpop.f32.mrb[0].mxu0
    %v1913 = vadd.f32 0.0, %v1912
    %v1914 = vpop.f32.mrb[0].mxu0
    %v1915 = vpop.f32.mrb[0].mxu0
    %v1916 = vadd.f32 0.0, %v1915
    %v1917 = vpop.f32.mrb[0].mxu0
    %1918 = vdwg.mxu0
    %v1919 = vmax.f32 %v1786, %v1905
    %v1920 = vmax.f32 %v1787, %v1908
    %v1921 = vmax.f32 %v1788, %v1913
    %v1922 = vmax.f32 %v1789, %v1916
    %v1923 = vld [vmem:[#allocation2 + $0xe0] sm:$0xf]
    %v1924 = vld [vmem:[#allocation2 + $0xe4] sm:$0xf]
    %v1925 = vld [vmem:[#allocation2 + $0xe8] sm:$0xf]
    %v1926 = vld [vmem:[#allocation2 + $0xec] sm:$0xf]
    %v1927 = vld [vmem:[#allocation2 + $0xf0] sm:$0xf]
    %v1928 = vld [vmem:[#allocation2 + $0xf4] sm:$0xf]
    %v1929 = vld [vmem:[#allocation2 + $0xf8] sm:$0xf]
    %v1930 = vld [vmem:[#allocation2 + $0xfc] sm:$0xf]
    %v1931 = vld [vmem:[#allocation2 + $0x100] sm:$0xf]
    %v1932 = vld [vmem:[#allocation2 + $0x104] sm:$0xf]
    %v1933 = vld [vmem:[#allocation2 + $0x108] sm:$0xf]
    %v1934 = vld [vmem:[#allocation2 + $0x10c] sm:$0xf]
    %v1935 = vld [vmem:[#allocation2 + $0x110] sm:$0xf]
    %v1936 = vld [vmem:[#allocation2 + $0x114] sm:$0xf]
    %v1937 = vld [vmem:[#allocation2 + $0x118] sm:$0xf]
    %v1938 = vld [vmem:[#allocation2 + $0x11c] sm:$0xf]
    %v1939 = vld [vmem:[#allocation2 + $0x120] sm:$0xf]
    %v1940 = vld [vmem:[#allocation2 + $0x124] sm:$0xf]
    %v1941 = vld [vmem:[#allocation2 + $0x128] sm:$0xf]
    %v1942 = vld [vmem:[#allocation2 + $0x12c] sm:$0xf]
    %v1963 = vunpack.c.l.b16 %v1923
    %v1964 = vunpack.c.l.b16 %v1924
    %v1965 = vunpack.c.l.b16 %v1925
    %v1966 = vunpack.c.l.b16 %v1926
    %v1967 = vunpack.c.l.b16 %v1927
    %v1968 = vunpack.c.l.b16 %v1928
    %v1969 = vunpack.c.l.b16 %v1929
    %v1970 = vunpack.c.l.b16 %v1930
    %v1971 = vunpack.c.l.b16 %v1931
    %v1972 = vunpack.c.l.b16 %v1932
    %v1973 = vunpack.c.l.b16 %v1933
    %v1974 = vunpack.c.l.b16 %v1934
    %v1975 = vunpack.c.l.b16 %v1935
    %v1976 = vunpack.c.l.b16 %v1936
    %v1977 = vunpack.c.l.b16 %v1937
    %v1978 = vunpack.c.l.b16 %v1938
    %v1979 = vunpack.c.l.b16 %v1939
    %v1980 = vunpack.c.l.b16 %v1940
    %v1981 = vunpack.c.l.b16 %v1941
    %v1982 = vunpack.c.l.b16 %v1942
    %v1983 = vpack.c.b16 %v1964, %v1963
    %v1984 = vpack.c.b16 %v1966, %v1965
    %v1985 = vpack.c.b16 %v1968, %v1967
    %v1986 = vpack.c.b16 %v1970, %v1969
    %v1987 = vpack.c.b16 %v1972, %v1971
    %v1988 = vpack.c.b16 %v1974, %v1973
    %v1989 = vpack.c.b16 %v1976, %v1975
    %v1990 = vpack.c.b16 %v1978, %v1977
    %v1991 = vpack.c.b16 %v1980, %v1979
    %v1992 = vpack.c.b16 %v1982, %v1981
    %2003 = vmatprep.subr.bf16.mxu0 0
    %2004 = vmatpush1.bf16.msra.mxu0 %v1983
    %2005 = vmatprep.subr.bf16.mxu0 0
    %2006 = vmatpush1.bf16.msra.mxu0 %v1984
    %2007 = vmatprep.subr.bf16.mxu0 0
    %2008 = vmatpush1.bf16.msra.mxu0 %v1985
    %2009 = vmatprep.subr.bf16.mxu0 0
    %2010 = vmatpush1.bf16.msra.mxu0 %v1986
    %2011 = vmatprep.subr.bf16.mxu0 0
    %2012 = vmatpush1.bf16.msra.mxu0 %v1987
    %2013 = vmatprep.subr.bf16.mxu0 0
    %2014 = vmatpush1.bf16.msra.mxu0 %v1988
    %2015 = vmatprep.subr.bf16.mxu0 0
    %2016 = vmatpush1.bf16.msra.mxu0 %v1989
    %2017 = vmatprep.subr.bf16.mxu0 0
    %2018 = vmatpush1.bf16.msra.mxu0 %v1990
    %2019 = vmatprep.subr.bf16.mxu0 0
    %2020 = vmatpush1.bf16.msra.mxu0 %v1991
    %2021 = vmatprep.subr.bf16.mxu0 0
    %2022 = vmatpush1.bf16.msra.mxu0 %v1992
    %2023 = vmatprep.subr.bf16.mxu0 0
    %2024 = vmatpush1.bf16.msra.mxu0 0
    %2025 = vmatprep.subr.bf16.mxu0 0
    %2026 = vmatpush1.bf16.msra.mxu0 0
    %2027 = vmatprep.subr.bf16.mxu0 0
    %2028 = vmatpush1.bf16.msra.mxu0 0
    %2029 = vmatprep.subr.bf16.mxu0 0
    %2030 = vmatpush1.bf16.msra.mxu0 0
    %2031 = vmatprep.subr.bf16.mxu0 0
    %2032 = vmatpush1.bf16.msra.mxu0 0
    %2033 = vmatprep.subr.bf16.mxu0 0
    %2034 = vmatpush1.bf16.msra.mxu0 0
    %2035 = vmatprep.mubr.bf16.mxu0 %v140
    %2036 = vmatmul.mubr.bf16.gmra.mrb[0].mxu0 %v72
    %v2037 = vpop.f32.mrb[0].mxu0
    %v2038 = vadd.f32 0.0, %v2037
    %v2039 = vpop.f32.mrb[0].mxu0
    %v2040 = vpop.f32.mrb[0].mxu0
    %v2041 = vadd.f32 0.0, %v2040
    %v2042 = vpop.f32.mrb[0].mxu0
    %2043 = vmatprep.mubr.bf16.mxu0 %v143
    %2044 = vmatmul.mubr.bf16.gmra.mrb[0].mxu0 %v74
    %v2045 = vpop.f32.mrb[0].mxu0
    %v2046 = vadd.f32 0.0, %v2045
    %v2047 = vpop.f32.mrb[0].mxu0
    %v2048 = vpop.f32.mrb[0].mxu0
    %v2049 = vadd.f32 0.0, %v2048
    %v2050 = vpop.f32.mrb[0].mxu0
    %2051 = vdwg.mxu0
    %v2052 = vmax.f32 %v1919, %v2038
    %v2053 = vmax.f32 %v1920, %v2041
    %v2054 = vmax.f32 %v1921, %v2046
    %v2055 = vmax.f32 %v1922, %v2049
    %v2056 = vld [vmem:[#allocation2 + $0xf0] sm:$0xf]
    %v2057 = vld [vmem:[#allocation2 + $0xf4] sm:$0xf]
    %v2058 = vld [vmem:[#allocation2 + $0xf8] sm:$0xf]
    %v2059 = vld [vmem:[#allocation2 + $0xfc] sm:$0xf]
    %v2060 = vld [vmem:[#allocation2 + $0x100] sm:$0xf]
    %v2061 = vld [vmem:[#allocation2 + $0x104] sm:$0xf]
    %v2062 = vld [vmem:[#allocation2 + $0x108] sm:$0xf]
    %v2063 = vld [vmem:[#allocation2 + $0x10c] sm:$0xf]
    %v2064 = vld [vmem:[#allocation2 + $0x110] sm:$0xf]
    %v2065 = vld [vmem:[#allocation2 + $0x114] sm:$0xf]
    %v2066 = vld [vmem:[#allocation2 + $0x118] sm:$0xf]
    %v2067 = vld [vmem:[#allocation2 + $0x11c] sm:$0xf]
    %v2068 = vld [vmem:[#allocation2 + $0x120] sm:$0xf]
    %v2069 = vld [vmem:[#allocation2 + $0x124] sm:$0xf]
    %v2070 = vld [vmem:[#allocation2 + $0x128] sm:$0xf]
    %v2071 = vld [vmem:[#allocation2 + $0x12c] sm:$0xf]
    %v2072 = vld [vmem:[#allocation2 + $0x130] sm:$0xf]
    %v2073 = vld [vmem:[#allocation2 + $0x134] sm:$0xf]
    %v2074 = vld [vmem:[#allocation2 + $0x138] sm:$0xf]
    %v2075 = vld [vmem:[#allocation2 + $0x13c] sm:$0xf]
    %v2096 = vunpack.c.l.b16 %v2056
    %v2097 = vunpack.c.l.b16 %v2057
    %v2098 = vunpack.c.l.b16 %v2058
    %v2099 = vunpack.c.l.b16 %v2059
    %v2100 = vunpack.c.l.b16 %v2060
    %v2101 = vunpack.c.l.b16 %v2061
    %v2102 = vunpack.c.l.b16 %v2062
    %v2103 = vunpack.c.l.b16 %v2063
    %v2104 = vunpack.c.l.b16 %v2064
    %v2105 = vunpack.c.l.b16 %v2065
    %v2106 = vunpack.c.l.b16 %v2066
    %v2107 = vunpack.c.l.b16 %v2067
    %v2108 = vunpack.c.l.b16 %v2068
    %v2109 = vunpack.c.l.b16 %v2069
    %v2110 = vunpack.c.l.b16 %v2070
    %v2111 = vunpack.c.l.b16 %v2071
    %v2112 = vunpack.c.l.b16 %v2072
    %v2113 = vunpack.c.l.b16 %v2073
    %v2114 = vunpack.c.l.b16 %v2074
    %v2115 = vunpack.c.l.b16 %v2075
    %v2116 = vpack.c.b16 %v2097, %v2096
    %v2117 = vpack.c.b16 %v2099, %v2098
    %v2118 = vpack.c.b16 %v2101, %v2100
    %v2119 = vpack.c.b16 %v2103, %v2102
    %v2120 = vpack.c.b16 %v2105, %v2104
    %v2121 = vpack.c.b16 %v2107, %v2106
    %v2122 = vpack.c.b16 %v2109, %v2108
    %v2123 = vpack.c.b16 %v2111, %v2110
    %v2124 = vpack.c.b16 %v2113, %v2112
    %v2125 = vpack.c.b16 %v2115, %v2114
    %2136 = vmatprep.subr.bf16.mxu0 0
    %2137 = vmatpush1.bf16.msra.mxu0 %v2116
    %2138 = vmatprep.subr.bf16.mxu0 0
    %2139 = vmatpush1.bf16.msra.mxu0 %v2117
    %2140 = vmatprep.subr.bf16.mxu0 0
    %2141 = vmatpush1.bf16.msra.mxu0 %v2118
    %2142 = vmatprep.subr.bf16.mxu0 0
    %2143 = vmatpush1.bf16.msra.mxu0 %v2119
    %2144 = vmatprep.subr.bf16.mxu0 0
    %2145 = vmatpush1.bf16.msra.mxu0 %v2120
    %2146 = vmatprep.subr.bf16.mxu0 0
    %2147 = vmatpush1.bf16.msra.mxu0 %v2121
    %2148 = vmatprep.subr.bf16.mxu0 0
    %2149 = vmatpush1.bf16.msra.mxu0 %v2122
    %2150 = vmatprep.subr.bf16.mxu0 0
    %2151 = vmatpush1.bf16.msra.mxu0 %v2123
    %2152 = vmatprep.subr.bf16.mxu0 0
    %2153 = vmatpush1.bf16.msra.mxu0 %v2124
    %2154 = vmatprep.subr.bf16.mxu0 0
    %2155 = vmatpush1.bf16.msra.mxu0 %v2125
    %2156 = vmatprep.subr.bf16.mxu0 0
    %2157 = vmatpush1.bf16.msra.mxu0 0
    %2158 = vmatprep.subr.bf16.mxu0 0
    %2159 = vmatpush1.bf16.msra.mxu0 0
    %2160 = vmatprep.subr.bf16.mxu0 0
    %2161 = vmatpush1.bf16.msra.mxu0 0
    %2162 = vmatprep.subr.bf16.mxu0 0
    %2163 = vmatpush1.bf16.msra.mxu0 0
    %2164 = vmatprep.subr.bf16.mxu0 0
    %2165 = vmatpush1.bf16.msra.mxu0 0
    %2166 = vmatprep.subr.bf16.mxu0 0
    %2167 = vmatpush1.bf16.msra.mxu0 0
    %2168 = vmatprep.mubr.bf16.mxu0 %v140
    %2169 = vmatmul.mubr.bf16.gmra.mrb[0].mxu0 %v72
    %v2170 = vpop.f32.mrb[0].mxu0
    %v2171 = vadd.f32 0.0, %v2170
    %v2172 = vpop.f32.mrb[0].mxu0
    %v2173 = vpop.f32.mrb[0].mxu0
    %v2174 = vadd.f32 0.0, %v2173
    %v2175 = vpop.f32.mrb[0].mxu0
    %2176 = vmatprep.mubr.bf16.mxu0 %v143
    %2177 = vmatmul.mubr.bf16.gmra.mrb[0].mxu0 %v74
    %v2178 = vpop.f32.mrb[0].mxu0
    %v2179 = vadd.f32 0.0, %v2178
    %v2180 = vpop.f32.mrb[0].mxu0
    %v2181 = vpop.f32.mrb[0].mxu0
    %v2182 = vadd.f32 0.0, %v2181
    %v2183 = vpop.f32.mrb[0].mxu0
    %2184 = vdwg.mxu0
    %v2185 = vmax.f32 %v2052, %v2171
    %v2186 = vmax.f32 %v2053, %v2174
    %v2187 = vmax.f32 %v2054, %v2179
    %v2188 = vmax.f32 %v2055, %v2182
    %v2189 = vld [vmem:[#allocation2 + $0x100] sm:$0xf]
    %v2190 = vld [vmem:[#allocation2 + $0x104] sm:$0xf]
    %v2191 = vld [vmem:[#allocation2 + $0x108] sm:$0xf]
    %v2192 = vld [vmem:[#allocation2 + $0x10c] sm:$0xf]
    %v2193 = vld [vmem:[#allocation2 + $0x110] sm:$0xf]
    %v2194 = vld [vmem:[#allocation2 + $0x114] sm:$0xf]
    %v2195 = vld [vmem:[#allocation2 + $0x118] sm:$0xf]
    %v2196 = vld [vmem:[#allocation2 + $0x11c] sm:$0xf]
    %v2197 = vld [vmem:[#allocation2 + $0x120] sm:$0xf]
    %v2198 = vld [vmem:[#allocation2 + $0x124] sm:$0xf]
    %v2199 = vld [vmem:[#allocation2 + $0x128] sm:$0xf]
    %v2200 = vld [vmem:[#allocation2 + $0x12c] sm:$0xf]
    %v2201 = vld [vmem:[#allocation2 + $0x130] sm:$0xf]
    %v2202 = vld [vmem:[#allocation2 + $0x134] sm:$0xf]
    %v2203 = vld [vmem:[#allocation2 + $0x138] sm:$0xf]
    %v2204 = vld [vmem:[#allocation2 + $0x13c] sm:$0xf]
    %v2205 = vld [vmem:[#allocation2 + $0x140] sm:$0xf]
    %v2206 = vld [vmem:[#allocation2 + $0x144] sm:$0xf]
    %v2207 = vld [vmem:[#allocation2 + $0x148] sm:$0xf]
    %v2208 = vld [vmem:[#allocation2 + $0x14c] sm:$0xf]
    %v2229 = vunpack.c.l.b16 %v2189
    %v2230 = vunpack.c.l.b16 %v2190
    %v2231 = vunpack.c.l.b16 %v2191
    %v2232 = vunpack.c.l.b16 %v2192
    %v2233 = vunpack.c.l.b16 %v2193
    %v2234 = vunpack.c.l.b16 %v2194
    %v2235 = vunpack.c.l.b16 %v2195
    %v2236 = vunpack.c.l.b16 %v2196
    %v2237 = vunpack.c.l.b16 %v2197
    %v2238 = vunpack.c.l.b16 %v2198
    %v2239 = vunpack.c.l.b16 %v2199
    %v2240 = vunpack.c.l.b16 %v2200
    %v2241 = vunpack.c.l.b16 %v2201
    %v2242 = vunpack.c.l.b16 %v2202
    %v2243 = vunpack.c.l.b16 %v2203
    %v2244 = vunpack.c.l.b16 %v2204
    %v2245 = vunpack.c.l.b16 %v2205
    %v2246 = vunpack.c.l.b16 %v2206
    %v2247 = vunpack.c.l.b16 %v2207
    %v2248 = vunpack.c.l.b16 %v2208
    %v2249 = vpack.c.b16 %v2230, %v2229
    %v2250 = vpack.c.b16 %v2232, %v2231
    %v2251 = vpack.c.b16 %v2234, %v2233
    %v2252 = vpack.c.b16 %v2236, %v2235
    %v2253 = vpack.c.b16 %v2238, %v2237
    %v2254 = vpack.c.b16 %v2240, %v2239
    %v2255 = vpack.c.b16 %v2242, %v2241
    %v2256 = vpack.c.b16 %v2244, %v2243
    %v2257 = vpack.c.b16 %v2246, %v2245
    %v2258 = vpack.c.b16 %v2248, %v2247
    %2269 = vmatprep.subr.bf16.mxu0 0
    %2270 = vmatpush1.bf16.msra.mxu0 %v2249
    %2271 = vmatprep.subr.bf16.mxu0 0
    %2272 = vmatpush1.bf16.msra.mxu0 %v2250
    %2273 = vmatprep.subr.bf16.mxu0 0
    %2274 = vmatpush1.bf16.msra.mxu0 %v2251
    %2275 = vmatprep.subr.bf16.mxu0 0
    %2276 = vmatpush1.bf16.msra.mxu0 %v2252
    %2277 = vmatprep.subr.bf16.mxu0 0
    %2278 = vmatpush1.bf16.msra.mxu0 %v2253
    %2279 = vmatprep.subr.bf16.mxu0 0
    %2280 = vmatpush1.bf16.msra.mxu0 %v2254
    %2281 = vmatprep.subr.bf16.mxu0 0
    %2282 = vmatpush1.bf16.msra.mxu0 %v2255
    %2283 = vmatprep.subr.bf16.mxu0 0
    %2284 = vmatpush1.bf16.msra.mxu0 %v2256
    %2285 = vmatprep.subr.bf16.mxu0 0
    %2286 = vmatpush1.bf16.msra.mxu0 %v2257
    %2287 = vmatprep.subr.bf16.mxu0 0
    %2288 = vmatpush1.bf16.msra.mxu0 %v2258
    %2289 = vmatprep.subr.bf16.mxu0 0
    %2290 = vmatpush1.bf16.msra.mxu0 0
    %2291 = vmatprep.subr.bf16.mxu0 0
    %2292 = vmatpush1.bf16.msra.mxu0 0
    %2293 = vmatprep.subr.bf16.mxu0 0
    %2294 = vmatpush1.bf16.msra.mxu0 0
    %2295 = vmatprep.subr.bf16.mxu0 0
    %2296 = vmatpush1.bf16.msra.mxu0 0
    %2297 = vmatprep.subr.bf16.mxu0 0
    %2298 = vmatpush1.bf16.msra.mxu0 0
    %2299 = vmatprep.subr.bf16.mxu0 0
    %2300 = vmatpush1.bf16.msra.mxu0 0
    %2301 = vmatprep.mubr.bf16.mxu0 %v140
    %2302 = vmatmul.mubr.bf16.gmra.mrb[0].mxu0 %v72
    %v2303 = vpop.f32.mrb[0].mxu0
    %v2304 = vadd.f32 0.0, %v2303
    %v2305 = vpop.f32.mrb[0].mxu0
    %v2306 = vpop.f32.mrb[0].mxu0
    %v2307 = vadd.f32 0.0, %v2306
    %v2308 = vpop.f32.mrb[0].mxu0
    %2309 = vmatprep.mubr.bf16.mxu0 %v143
    %2310 = vmatmul.mubr.bf16.gmra.mrb[0].mxu0 %v74
    %v2311 = vpop.f32.mrb[0].mxu0
    %v2312 = vadd.f32 0.0, %v2311
    %v2313 = vpop.f32.mrb[0].mxu0
    %v2314 = vpop.f32.mrb[0].mxu0
    %v2315 = vadd.f32 0.0, %v2314
    %v2316 = vpop.f32.mrb[0].mxu0
    %2317 = vdwg.mxu0
    %v2318 = vmax.f32 %v2185, %v2304
    %v2319 = vmax.f32 %v2186, %v2307
    %v2320 = vmax.f32 %v2187, %v2312
    %v2321 = vmax.f32 %v2188, %v2315
    %v2322 = vld [vmem:[%s2] sm:$0xff]
    %v2323 = vld [vmem:[%s2 + $0x8] sm:$0xff]
    %v2324 = vld [vmem:[%s2 + $0x10] sm:$0xff]
    %v2325 = vld [vmem:[%s2 + $0x18] sm:$0xff]
    %2327 = vset.pattern.permute.xlu0 0
    %2328 = vperm.xlu0 %2327, %v2322
    %v2329 = vpop.permute.xlu0 %2328
    %2332 = vset.pattern.permute.xlu0 0
    %2333 = vperm.xlu0 %2332, %v2323
    %v2334 = vpop.permute.xlu0 %2333
    %2337 = vset.pattern.permute.xlu0 0
    %2338 = vperm.xlu0 %2337, %v2324
    %v2339 = vpop.permute.xlu0 %2338
    %2342 = vset.pattern.permute.xlu0 0
    %2343 = vperm.xlu0 %2342, %v2325
    %v2344 = vpop.permute.xlu0 %2343
    %v2346 = vadd.f32 %v2318, %v2329
    %v2347 = vadd.f32 %v2319, %v2334
    %v2348 = vadd.f32 %v2320, %v2339
    %v2349 = vadd.f32 %v2321, %v2344
    %v2350 = vmax.f32 %v2346, 0.0
    %v2351 = vmax.f32 %v2347, 0.0
    %v2352 = vmax.f32 %v2348, 0.0
    %v2353 = vmax.f32 %v2349, 0.0
    %v2354 = vld [vmem:[%s3] sm:$0xf]
    %v2355 = vld [vmem:[%s3 + $0x4] sm:$0xf]
    %v2356 = vld [vmem:[%s3 + $0x8] sm:$0xf]
    %v2357 = vld [vmem:[%s3 + $0xc] sm:$0xf]
    %v2358 = vld [vmem:[%s3 + $0x10] sm:$0xf]
    %v2359 = vld [vmem:[%s3 + $0x14] sm:$0xf]
    %v2360 = vld [vmem:[%s3 + $0x18] sm:$0xf]
    %v2361 = vld [vmem:[%s3 + $0x1c] sm:$0xf]
    %v2362 = vpack.c.bf16 %v2351, %v2350
    %v2363 = vpack.c.bf16 %v2353, %v2352
    %v2364 = vld [vmem:[%s4] sm:$0xff]
    %v2365 = vld [vmem:[%s4 + $0x8] sm:$0xff]
    %v2366 = vld [vmem:[%s4 + $0x10] sm:$0xff]
    %v2367 = vld [vmem:[%s4 + $0x18] sm:$0xff]
    %v2368 = vld [vmem:[%s4 + $0x20] sm:$0xff]
    %v2369 = vld [vmem:[%s4 + $0x28] sm:$0xff]
    %v2370 = vld [vmem:[%s4 + $0x30] sm:$0xff]
    %v2371 = vld [vmem:[%s4 + $0x38] sm:$0xff]
    %2373 = vset.pattern.permute.xlu0 0
    %2374 = vperm.xlu0 %2373, %v2364
    %v2375 = vpop.permute.xlu0 %2374
    %2378 = vset.pattern.permute.xlu0 0
    %2379 = vperm.xlu0 %2378, %v2365
    %v2380 = vpop.permute.xlu0 %2379
    %2383 = vset.pattern.permute.xlu0 0
    %2384 = vperm.xlu0 %2383, %v2366
    %v2385 = vpop.permute.xlu0 %2384
    %2388 = vset.pattern.permute.xlu0 0
    %2389 = vperm.xlu0 %2388, %v2367
    %v2390 = vpop.permute.xlu0 %2389
    %2393 = vset.pattern.permute.xlu0 0
    %2394 = vperm.xlu0 %2393, %v2368
    %v2395 = vpop.permute.xlu0 %2394
    %2398 = vset.pattern.permute.xlu0 0
    %2399 = vperm.xlu0 %2398, %v2369
    %v2400 = vpop.permute.xlu0 %2399
    %2403 = vset.pattern.permute.xlu0 0
    %2404 = vperm.xlu0 %2403, %v2370
    %v2405 = vpop.permute.xlu0 %2404
    %2408 = vset.pattern.permute.xlu0 0
    %2409 = vperm.xlu0 %2408, %v2371
    %v2410 = vpop.permute.xlu0 %2409
    %v2420 = vunpack.c.l.b16 %v2354
    %v2421 = vunpack.c.l.b16 %v2355
    %v2422 = vunpack.c.l.b16 %v2356
    %v2423 = vunpack.c.l.b16 %v2357
    %v2424 = vunpack.c.l.b16 %v2358
    %v2425 = vunpack.c.l.b16 %v2359
    %v2426 = vunpack.c.l.b16 %v2360
    %v2427 = vunpack.c.l.b16 %v2361
    %v2428 = vpack.c.b16 %v2421, %v2420
    %v2429 = vpack.c.b16 %v2423, %v2422
    %v2430 = vpack.c.b16 %v2425, %v2424
    %v2431 = vpack.c.b16 %v2427, %v2426
    %v2433 = vsel %vm138, %v2428, 0
    %v2436 = vsel %vm138, %v2429, 0
    %v2439 = vsel %vm138, %v2430, 0
    %v2442 = vsel %vm138, %v2431, 0
    %2444 = vmatprep.subr.bf16.mxu0 0
    %2445 = vmatpush1.bf16.msra.mxu0 %v2362
    %2446 = vmatprep.subr.bf16.mxu0 0
    %2447 = vmatpush1.bf16.msra.mxu0 %v2363
    %2448 = vmatprep.subr.bf16.mxu0 0
    %2449 = vmatpush1.bf16.msra.mxu0 0
    %2450 = vmatprep.subr.bf16.mxu0 0
    %2451 = vmatpush1.bf16.msra.mxu0 0
    %2452 = vmatprep.subr.bf16.mxu0 0
    %2453 = vmatpush1.bf16.msra.mxu0 0
    %2454 = vmatprep.subr.bf16.mxu0 0
    %2455 = vmatpush1.bf16.msra.mxu0 0
    %2456 = vmatprep.subr.bf16.mxu0 0
    %2457 = vmatpush1.bf16.msra.mxu0 0
    %2458 = vmatprep.subr.bf16.mxu0 0
    %2459 = vmatpush1.bf16.msra.mxu0 0
    %2460 = vmatprep.subr.bf16.mxu0 0
    %2461 = vmatpush1.bf16.msra.mxu0 0
    %2462 = vmatprep.subr.bf16.mxu0 0
    %2463 = vmatpush1.bf16.msra.mxu0 0
    %2464 = vmatprep.subr.bf16.mxu0 0
    %2465 = vmatpush1.bf16.msra.mxu0 0
    %2466 = vmatprep.subr.bf16.mxu0 0
    %2467 = vmatpush1.bf16.msra.mxu0 0
    %2468 = vmatprep.subr.bf16.mxu0 0
    %2469 = vmatpush1.bf16.msra.mxu0 0
    %2470 = vmatprep.subr.bf16.mxu0 0
    %2471 = vmatpush1.bf16.msra.mxu0 0
    %2472 = vmatprep.subr.bf16.mxu0 0
    %2473 = vmatpush1.bf16.msra.mxu0 0
    %2474 = vmatprep.subr.bf16.mxu0 0
    %2475 = vmatpush1.bf16.msra.mxu0 0
    %2476 = vmatprep.mubr.bf16.mxu0 0
    %2477 = vmatmul.mubr.bf16.gmra.mrb[0].mxu0 %v2433
    %v2478 = vpop.f32.mrb[0].mxu0
    %v2479 = vadd.f32 %v2375, %v2478
    %v2480 = vpop.f32.mrb[0].mxu0
    %v2481 = vpop.f32.mrb[0].mxu0
    %v2482 = vadd.f32 %v2380, %v2481
    %v2483 = vpop.f32.mrb[0].mxu0
    %2484 = vmatprep.mubr.bf16.mxu0 0
    %2485 = vmatmul.mubr.bf16.gmra.mrb[0].mxu0 %v2436
    %v2486 = vpop.f32.mrb[0].mxu0
    %v2487 = vadd.f32 %v2385, %v2486
    %v2488 = vpop.f32.mrb[0].mxu0
    %v2489 = vpop.f32.mrb[0].mxu0
    %v2490 = vadd.f32 %v2390, %v2489
    %v2491 = vpop.f32.mrb[0].mxu0
    %2492 = vmatprep.mubr.bf16.mxu0 0
    %2493 = vmatmul.mubr.bf16.gmra.mrb[0].mxu0 %v2439
    %v2494 = vpop.f32.mrb[0].mxu0
    %v2495 = vadd.f32 %v2395, %v2494
    %v2496 = vpop.f32.mrb[0].mxu0
    %v2497 = vpop.f32.mrb[0].mxu0
    %v2498 = vadd.f32 %v2400, %v2497
    %v2499 = vpop.f32.mrb[0].mxu0
    %2500 = vmatprep.mubr.bf16.mxu0 0
    %2501 = vmatmul.mubr.bf16.gmra.mrb[0].mxu0 %v2442
    %v2502 = vpop.f32.mrb[0].mxu0
    %v2503 = vadd.f32 %v2405, %v2502
    %v2504 = vpop.f32.mrb[0].mxu0
    %v2505 = vpop.f32.mrb[0].mxu0
    %v2506 = vadd.f32 %v2410, %v2505
    %v2507 = vpop.f32.mrb[0].mxu0
    %2508 = vdwg.mxu0
    %v2509 = vmax.f32 %v2479, 0.0
    %v2510 = vmax.f32 %v2482, 0.0
    %v2511 = vmax.f32 %v2487, 0.0
    %v2512 = vmax.f32 %v2490, 0.0
    %v2513 = vxor.u32 %v2495, 2147483648
    %v2514 = vxor.u32 %v2498, 2147483648
    %v2515 = vxor.u32 %v2503, 2147483648
    %v2516 = vxor.u32 %v2506, 2147483648
    %v2517 = vmul.f32 %v2513, 1.442695
    %v2518 = vpow.pop %v2517
    %v2519 = vmul.f32 %v2514, 1.442695
    %v2520 = vpow.pop %v2519
    %v2521 = vmul.f32 %v2515, 1.442695
    %v2522 = vpow.pop %v2521
    %v2523 = vmul.f32 %v2516, 1.442695
    %v2524 = vpow.pop %v2523
    %v2525 = vadd.f32 %v2518, 1.0
    %v2526 = vadd.f32 %v2520, 1.0
    %v2527 = vadd.f32 %v2522, 1.0
    %v2528 = vadd.f32 %v2524, 1.0
    %v2529 = vrcp.pop %v2525
    %v2530 = vmul.f32 1.0, %v2529
    %v2531 = vrcp.pop %v2526
    %v2532 = vmul.f32 1.0, %v2531
    %v2533 = vrcp.pop %v2527
    %v2534 = vmul.f32 1.0, %v2533
    %v2535 = vrcp.pop %v2528
    %v2536 = vmul.f32 1.0, %v2535
    %v2537 = vmul.f32 %v2530, %v2509
    %v2538 = vmul.f32 %v2532, %v2510
    %v2539 = vmul.f32 %v2534, %v2511
    %v2540 = vmul.f32 %v2536, %v2512
    %v2541 = vsub.f32 1.0, %v2530
    %v2542 = vsub.f32 1.0, %v2532
    %v2543 = vsub.f32 1.0, %v2534
    %v2544 = vsub.f32 1.0, %v2536
    %v2545 = vmul.f32 %v2541, %v2350
    %v2546 = vmul.f32 %v2542, %v2351
    %v2547 = vmul.f32 %v2543, %v2352
    %v2548 = vmul.f32 %v2544, %v2353
    %v2549 = vadd.f32 %v2537, %v2545
    %v2550 = vadd.f32 %v2538, %v2546
    %v2551 = vadd.f32 %v2539, %v2547
    %v2552 = vadd.f32 %v2540, %v2548
    %2553 = vst [vmem:[#allocation5] sm:$0xff] %v2549
    %2554 = vst [vmem:[#allocation5 + $0x8] sm:$0xff] %v2550
    %2555 = vst [vmem:[#allocation5 + $0x10] sm:$0xff] %v2551
    %2556 = vst [vmem:[#allocation5 + $0x18] sm:$0xff] %v2552
    // Predicated region
    $region26: #{tpu_custom_call.1} parent=1 // pred_check
      _
    $region27: #{tpu_custom_call.1} parent=1 // pred_check_branch
      %2558 = sbr.rel (0) target = $region29
    $region28: #{tpu_custom_call.1} parent=1 // pred_region
      %s2560 = ssub.s32 512, 512
      %2561 = vsyncadd [#allocation4], %s2560
      %s2562 = sshll.u32 [#allocation5], 4
      %s2563 = int_to_ptr.vmem [resolvable:$true] %s2562
      %2568 = dma.vmem_to_hbm [thread:$0]  %s2563, 512, %s5, [#allocation4], 128, 128, 8
    $region29: #{tpu_custom_call.1} parent=1 // pred_fallthru
      _
    // Predicated region
    $region30: #{tpu_custom_call.1} parent=1 // pred_check
      _
    $region31: #{tpu_custom_call.1} parent=1 // pred_check_branch
      %2570 = sbr.rel (0) target = $region33
    $region32: #{tpu_custom_call.1} parent=1 // pred_region
      %2571 = dma.done [#allocation4], 512
    $region33: #{tpu_custom_call.1} parent=1 // pred_fallthru
      _
    %2572 = vsyncpa [#allocation3], 1
    %2573 = vsyncpa [#allocation4], 1

</llo_original>
